<compile_context>
chip_gen: v5e
topology: v5e:2x2
jax: 0.10.0
libtpu: 0.0.40
codegen_flags: <defaults>
</compile_context>

<pallas_src>
import jax
import jax.numpy as jnp
from jax.experimental import pallas as pl
from jax.experimental.pallas import tpu as pltpu

# ---- model dimensions -------------------------------------------------------
IN_DIM = 784           # 1*28*28 (nn.Flatten of the NCHW input)
H = 64                 # encoder feature width
NZ = 8                 # latent dim (self.nz)

# 128-aligned offsets inside the packed bias slab [enc_b | lat_b | up_b | dec_b]
ENC_B_OFF = 0
LAT_B_OFF = 128
UP_B_OFF = 256
DEC_B_OFF = 384
BIAS_W = DEC_B_OFF + IN_DIM   # 1168


def _round_up(x, m):
    return ((x + m - 1) // m) * m


def _pick_tile_b(b):
    """Rows per grid step: large tiles (64..512) but ~4 grid steps when possible."""
    tile = _round_up(max(1, pl.cdiv(b, 4)), 8)
    tile = max(64, min(512, tile))
    if tile >= b:                      # batch too small to split usefully
        tile = _round_up(b, 8)
    return tile


# ---- kernel -----------------------------------------------------------------
def vae_forward_kernel(
    x_ref,        # (TILE_B, IN_DIM)  f32    flattened input (cast to bf16 here)
    eps_ref,      # (TILE_B, NZ)      f32    standard-normal noise
    enc_w_ref,    # (IN_DIM, H)       bf16
    lat_w_ref,    # (H, 2*NZ)         f32    fused fc_downscale o {mu_net, sigma_net}
    up_w_ref,     # (NZ, H)           f32
    dec_w_ref,    # (H, IN_DIM)       bf16
    bias_ref,     # (1, BIAS_W)       f32    packed [enc_b | lat_b | up_b | dec_b]
    dec_out_ref,  # (TILE_B, IN_DIM)  bf16 (or f32)
    lat_out_ref,  # (TILE_B, 3*NZ)    f32    packed [mu | sigma | z]
):
    # Biases: single packed DMA, sliced at 128-aligned lane offsets.
    enc_b = bias_ref[:, ENC_B_OFF:ENC_B_OFF + H]
    lat_b = bias_ref[:, LAT_B_OFF:LAT_B_OFF + 2 * NZ]
    up_b = bias_ref[:, UP_B_OFF:UP_B_OFF + H]
    dec_b = bias_ref[:, DEC_B_OFF:DEC_B_OFF + IN_DIM]

    # encoder: Linear + ReLU (bf16 operands, f32 accumulation; cast in-kernel
    # so no separate XLA pad/cast pass touches HBM before the kernel).
    x_bf16 = x_ref[...].astype(jnp.bfloat16)
    feat = jnp.dot(x_bf16, enc_w_ref[...],
                   preferred_element_type=jnp.float32) + enc_b
    feat = jnp.maximum(feat, 0.0)

    # fused fc_downscale / mu_net / sigma_net: one (H, 2*NZ) matmul, split in-register
    lat_pre = jnp.dot(feat, lat_w_ref[...],
                      preferred_element_type=jnp.float32) + lat_b
    mu = lat_pre[:, :NZ]
    sigma = 1e-6 + jax.nn.softplus(lat_pre[:, NZ:])

    # reparametrize
    z = mu + sigma * eps_ref[...]

    # decode: fc_upscale + ReLU, then decoder Linear + sigmoid
    h_up = jnp.dot(z, up_w_ref[...], preferred_element_type=jnp.float32) + up_b
    h_up = jnp.maximum(h_up, 0.0)
    logits = jnp.dot(h_up.astype(dec_w_ref.dtype), dec_w_ref[...],
                     preferred_element_type=jnp.float32) + dec_b

    # sigmoid = 1 / (1 + exp(-x)) via EUP exp + approx reciprocal; clamp covers
    # the tiny approx-recip overshoot so the output stays in [0, 1].
    sig = pl.reciprocal(1.0 + jnp.exp(-logits), approx=True)
    dec_out_ref[...] = jnp.minimum(sig, 1.0).astype(dec_out_ref.dtype)
    lat_out_ref[...] = jnp.concatenate([mu, sigma, z], axis=-1)


# ---- parameters -------------------------------------------------------------
def init_params(key):
    """Raw parameters with PyTorch-equivalent semantics (W stored as (in, out))."""
    ks = jax.random.split(key, 6)

    def lin(k, fan_in, fan_out):
        w = jax.random.normal(k, (fan_in, fan_out), jnp.float32) / jnp.sqrt(fan_in)
        b = jnp.zeros((1, fan_out), jnp.float32)
        return w, b

    enc_w, enc_b = lin(ks[0], IN_DIM, H)
    down_w, down_b = lin(ks[1], H, 2 * NZ)
    mu_w, mu_b = lin(ks[2], NZ, NZ)
    sg_w, sg_b = lin(ks[3], NZ, NZ)
    up_w, up_b = lin(ks[4], NZ, H)
    dec_w, dec_b = lin(ks[5], H, IN_DIM)
    return dict(enc_w=enc_w, enc_b=enc_b, down_w=down_w, down_b=down_b,
                mu_w=mu_w, mu_b=mu_b, sg_w=sg_w, sg_b=sg_b,
                up_w=up_w, up_b=up_b, dec_w=dec_w, dec_b=dec_b)


def prepare_packed_params(p):
    """Fold, cast and pack the raw params once (exact algebra; trace-time)."""
    # Fold mu_net / sigma_net into fc_downscale:
    #   mu = (feat @ Wd[:, :nz] + bd[:, :nz]) @ Wmu + bmu
    #      =  feat @ (Wd[:, :nz] @ Wmu) + (bd[:, :nz] @ Wmu + bmu)
    w_mu = p["down_w"][:, :NZ] @ p["mu_w"]
    b_mu = p["down_b"][:, :NZ] @ p["mu_w"] + p["mu_b"]
    w_sg = p["down_w"][:, NZ:] @ p["sg_w"]
    b_sg = p["down_b"][:, NZ:] @ p["sg_w"] + p["sg_b"]
    lat_w = jnp.concatenate([w_mu, w_sg], axis=1)        # (H, 2*NZ)
    lat_b = jnp.concatenate([b_mu, b_sg], axis=1)        # (1, 2*NZ)

    # Big weights in bf16 for the MXU; no lane padding (K/N stay at 784).
    enc_w = p["enc_w"].astype(jnp.bfloat16)              # (784, H)
    dec_w = p["dec_w"].astype(jnp.bfloat16)              # (H, 784)

    # Pack all biases into one lane-aligned VMEM input.
    bias = jnp.zeros((1, BIAS_W), jnp.float32)
    bias = bias.at[:, ENC_B_OFF:ENC_B_OFF + H].set(p["enc_b"])
    bias = bias.at[:, LAT_B_OFF:LAT_B_OFF + 2 * NZ].set(lat_b)
    bias = bias.at[:, UP_B_OFF:UP_B_OFF + H].set(p["up_b"])
    bias = bias.at[:, DEC_B_OFF:DEC_B_OFF + IN_DIM].set(p["dec_b"])

    return dict(enc_w=enc_w, lat_w=lat_w, up_w=p["up_w"], dec_w=dec_w, bias=bias)


# ---- wrapper ----------------------------------------------------------------
def base_vae_forward(x_nchw, packed, eps, dec_dtype=jnp.bfloat16):
    """x_nchw: (B, 1, 28, 28) f32; eps: (B, NZ) standard normal f32."""
    b = x_nchw.shape[0]
    x_flat = x_nchw.reshape(b, IN_DIM)                   # nn.Flatten (row-major)

    tile_b = _pick_tile_b(b)
    b_pad = _round_up(b, tile_b)
    if b_pad != b:                                       # small batch-only padding
        x_flat = jnp.pad(x_flat, ((0, b_pad - b), (0, 0)))
        eps = jnp.pad(eps, ((0, b_pad - b), (0, 0)))

    row = lambda i: (i, 0)     # batch-tiled arrays
    const = lambda i: (0, 0)   # weights: VMEM-resident across grid steps

    weight_bytes = sum(int(v.size) * v.dtype.itemsize for v in packed.values())
    cost = pl.CostEstimate(
        flops=int(2 * b_pad * (IN_DIM * H + H * 2 * NZ + NZ * H + H * IN_DIM)),
        transcendentals=int(b_pad * (2 * IN_DIM + 2 * NZ)),
        bytes_accessed=int(b_pad * IN_DIM * 4 + b_pad * NZ * 4 + weight_bytes
                           + b_pad * IN_DIM * jnp.dtype(dec_dtype).itemsize
                           + b_pad * 3 * NZ * 4),
    )

    dec, lat = pl.pallas_call(
        vae_forward_kernel,
        out_shape=(
            jax.ShapeDtypeStruct((b_pad, IN_DIM), dec_dtype),     # decoded
            jax.ShapeDtypeStruct((b_pad, 3 * NZ), jnp.float32),   # [mu | sigma | z]
        ),
        grid=(b_pad // tile_b,),
        in_specs=[
            pl.BlockSpec((tile_b, IN_DIM), row),        # x (f32, unpadded width)
            pl.BlockSpec((tile_b, NZ), row),            # eps
            pl.BlockSpec((IN_DIM, H), const),           # enc_w
            pl.BlockSpec((H, 2 * NZ), const),           # lat_w (fused downscale)
            pl.BlockSpec((NZ, H), const),               # up_w
            pl.BlockSpec((H, IN_DIM), const),           # dec_w
            pl.BlockSpec((1, BIAS_W), const),           # packed biases
        ],
        out_specs=(
            pl.BlockSpec((tile_b, IN_DIM), row),
            pl.BlockSpec((tile_b, 3 * NZ), row),
        ),
        compiler_params=pltpu.CompilerParams(
            dimension_semantics=("parallel",)),          # v7x: shard over 2 TCs
        cost_estimate=cost,
    )(x_flat, eps, packed["enc_w"], packed["lat_w"], packed["up_w"],
      packed["dec_w"], packed["bias"])

    decoded = dec[:b].reshape(b, 1, 28, 28)              # back to NCHW (no col slice)
    mu = lat[:b, :NZ]
    sigma = lat[:b, NZ:2 * NZ]
    z = lat[:b, 2 * NZ:]
    return decoded, mu, sigma, z


# ---- demo -------------------------------------------------------------------
if __name__ == "__main__":
    key = jax.random.PRNGKey(0)
    k_params, k_x, k_eps = jax.random.split(key, 3)

    raw_params = init_params(k_params)
    packed = prepare_packed_params(raw_params)

    B = 256  # -> TILE_B=64, 4 grid steps: exercises the batch grid / both v7x cores
    x = jax.random.normal(k_x, (B, 1, 28, 28), jnp.float32)
    eps = jax.random.normal(k_eps, (B, NZ), jnp.float32)  # torch.randn_like(mu)

    fwd = jax.jit(base_vae_forward)
    decoded, mu, sigma, z = jax.block_until_ready(fwd(x, packed, eps))

    assert decoded.shape == (B, 1, 28, 28)
    assert mu.shape == (B, NZ) and sigma.shape == (B, NZ) and z.shape == (B, NZ)
    dec_f32 = decoded.astype(jnp.float32)
    assert bool(jnp.all(jnp.isfinite(dec_f32)))
    assert bool(jnp.all((dec_f32 >= 0.0) & (dec_f32 <= 1.0)))   # sigmoid output
    assert bool(jnp.all(sigma > 0.0))                           # 1e-6 + softplus > 0
    print("KERNEL_OK")
</pallas_src>

<mosaic_0001>
module attributes {stable_mosaic.version = 11 : i64} {
  func.func @vae_forward_kernel(%arg0: i32, %arg1: memref<64x784xf32, #tpu.memory_space<vmem>>, %arg2: memref<64x8xf32, #tpu.memory_space<vmem>>, %arg3: memref<784x64xbf16, #tpu.memory_space<vmem>>, %arg4: memref<64x16xf32, #tpu.memory_space<vmem>>, %arg5: memref<8x64xf32, #tpu.memory_space<vmem>>, %arg6: memref<64x784xbf16, #tpu.memory_space<vmem>>, %arg7: memref<1x1168xf32, #tpu.memory_space<vmem>>, %arg8: memref<64x784xbf16, #tpu.memory_space<vmem>>, %arg9: memref<64x24xf32, #tpu.memory_space<vmem>>) attributes {dimension_semantics = [#tpu.dimension_semantics<parallel>], iteration_bounds = array<i64: 4>, scalar_prefetch = 0 : i64, scratch_operands = 0 : i64, tpu.core_type = #tpu.core_type<tc>, window_params = [{transform_indices = @transform_0, window_bounds = array<i64: 64, 784>}, {transform_indices = @transform_1, window_bounds = array<i64: 64, 8>}, {pipeline_mode = #tpu.pipeline_mode<synchronous>, transform_indices = @transform_2, window_bounds = array<i64: 784, 64>}, {pipeline_mode = #tpu.pipeline_mode<synchronous>, transform_indices = @transform_3, window_bounds = array<i64: 64, 16>}, {pipeline_mode = #tpu.pipeline_mode<synchronous>, transform_indices = @transform_4, window_bounds = array<i64: 8, 64>}, {pipeline_mode = #tpu.pipeline_mode<synchronous>, transform_indices = @transform_5, window_bounds = array<i64: 64, 784>}, {pipeline_mode = #tpu.pipeline_mode<synchronous>, transform_indices = @transform_6, window_bounds = array<i64: 1, 1168>}, {transform_indices = @transform_7, window_bounds = array<i64: 64, 784>}, {transform_indices = @transform_8, window_bounds = array<i64: 64, 24>}]} {
    %c0 = arith.constant 0 : index
    %c0_0 = arith.constant 0 : index
    %0 = vector.load %arg7[%c0, %c0_0] : memref<1x1168xf32, #tpu.memory_space<vmem>>, vector<1x64xf32>
    %c0_1 = arith.constant 0 : index
    %c128 = arith.constant 128 : index
    %1 = vector.load %arg7[%c0_1, %c128] : memref<1x1168xf32, #tpu.memory_space<vmem>>, vector<1x16xf32>
    %c0_2 = arith.constant 0 : index
    %c256 = arith.constant 256 : index
    %2 = vector.load %arg7[%c0_2, %c256] : memref<1x1168xf32, #tpu.memory_space<vmem>>, vector<1x64xf32>
    %c0_3 = arith.constant 0 : index
    %c384 = arith.constant 384 : index
    %3 = vector.load %arg7[%c0_3, %c384] : memref<1x1168xf32, #tpu.memory_space<vmem>>, vector<1x784xf32>
    %c0_4 = arith.constant 0 : index
    %c0_5 = arith.constant 0 : index
    %4 = vector.load %arg1[%c0_4, %c0_5] : memref<64x784xf32, #tpu.memory_space<vmem>>, vector<64x784xf32>
    %5 = arith.truncf %4 : vector<64x784xf32> to vector<64x784xbf16>
    %c0_6 = arith.constant 0 : index
    %c0_7 = arith.constant 0 : index
    %6 = vector.load %arg3[%c0_6, %c0_7] : memref<784x64xbf16, #tpu.memory_space<vmem>>, vector<784x64xbf16>
    %cst = arith.constant dense<0.000000e+00> : vector<64x64xf32>
    %7 = tpu.matmul %5, %6, %cst {dimension_numbers = #tpu.dot_dimension_numbers<[1], [0], [0], [1], [0, 0, 1, 1], [], []>} : vector<64x784xbf16>, vector<784x64xbf16>, vector<64x64xf32> -> vector<64x64xf32>
    %8 = vector.broadcast %0 : vector<1x64xf32> to vector<64x64xf32>
    %9 = arith.addf %7, %8 : vector<64x64xf32>
    %cst_8 = arith.constant 0.000000e+00 : f32
    %10 = vector.broadcast %cst_8 : f32 to vector<64x64xf32>
    %11 = arith.maximumf %9, %10 : vector<64x64xf32>
    %c0_9 = arith.constant 0 : index
    %c0_10 = arith.constant 0 : index
    %12 = vector.load %arg4[%c0_9, %c0_10] : memref<64x16xf32, #tpu.memory_space<vmem>>, vector<64x16xf32>
    %cst_11 = arith.constant dense<0.000000e+00> : vector<64x16xf32>
    %13 = tpu.matmul %11, %12, %cst_11 {dimension_numbers = #tpu.dot_dimension_numbers<[1], [0], [0], [1], [0, 0, 1, 1], [], []>} : vector<64x64xf32>, vector<64x16xf32>, vector<64x16xf32> -> vector<64x16xf32>
    %14 = vector.broadcast %1 : vector<1x16xf32> to vector<64x16xf32>
    %15 = arith.addf %13, %14 : vector<64x16xf32>
    %16 = vector.extract_strided_slice %15 {offsets = [0, 0], sizes = [64, 8], strides = [1, 1]} : vector<64x16xf32> to vector<64x8xf32>
    %17 = vector.extract_strided_slice %15 {offsets = [0, 8], sizes = [64, 8], strides = [1, 1]} : vector<64x16xf32> to vector<64x8xf32>
    %cst_12 = arith.constant 0.000000e+00 : f32
    %18 = vector.broadcast %cst_12 : f32 to vector<64x8xf32>
    %19 = arith.maximumf %17, %18 : vector<64x8xf32>
    %20 = vector.broadcast %cst_12 : f32 to vector<64x8xf32>
    %21 = arith.subf %17, %20 : vector<64x8xf32>
    %22 = arith.cmpf one, %21, %21 : vector<64x8xf32>
    %23 = vector.broadcast %cst_12 : f32 to vector<64x8xf32>
    %24 = arith.addf %17, %23 : vector<64x8xf32>
    %25 = math.absf %21 : vector<64x8xf32>
    %cst_13 = arith.constant 0.000000e+00 : f32
    %26 = vector.broadcast %cst_13 : f32 to vector<64x8xf32>
    %27 = arith.subf %26, %25 : vector<64x8xf32>
    %28 = math.exp %27 : vector<64x8xf32>
    %29 = math.log1p %28 : vector<64x8xf32>
    %30 = arith.addf %19, %29 : vector<64x8xf32>
    %31 = arith.select %22, %24, %30 : vector<64x8xi1>, vector<64x8xf32>
    %cst_14 = arith.constant 9.99999997E-7 : f32
    %32 = vector.broadcast %cst_14 : f32 to vector<64x8xf32>
    %33 = arith.addf %32, %31 : vector<64x8xf32>
    %c0_15 = arith.constant 0 : index
    %c0_16 = arith.constant 0 : index
    %34 = vector.load %arg2[%c0_15, %c0_16] : memref<64x8xf32, #tpu.memory_space<vmem>>, vector<64x8xf32>
    %35 = arith.mulf %33, %34 : vector<64x8xf32>
    %36 = arith.addf %16, %35 : vector<64x8xf32>
    %c0_17 = arith.constant 0 : index
    %c0_18 = arith.constant 0 : index
    %37 = vector.load %arg5[%c0_17, %c0_18] : memref<8x64xf32, #tpu.memory_space<vmem>>, vector<8x64xf32>
    %cst_19 = arith.constant dense<0.000000e+00> : vector<64x64xf32>
    %38 = tpu.matmul %36, %37, %cst_19 {dimension_numbers = #tpu.dot_dimension_numbers<[1], [0], [0], [1], [0, 0, 1, 1], [], []>} : vector<64x8xf32>, vector<8x64xf32>, vector<64x64xf32> -> vector<64x64xf32>
    %39 = vector.broadcast %2 : vector<1x64xf32> to vector<64x64xf32>
    %40 = arith.addf %38, %39 : vector<64x64xf32>
    %cst_20 = arith.constant 0.000000e+00 : f32
    %41 = vector.broadcast %cst_20 : f32 to vector<64x64xf32>
    %42 = arith.maximumf %40, %41 : vector<64x64xf32>
    %43 = arith.truncf %42 : vector<64x64xf32> to vector<64x64xbf16>
    %c0_21 = arith.constant 0 : index
    %c0_22 = arith.constant 0 : index
    %44 = vector.load %arg6[%c0_21, %c0_22] : memref<64x784xbf16, #tpu.memory_space<vmem>>, vector<64x784xbf16>
    %cst_23 = arith.constant dense<0.000000e+00> : vector<64x784xf32>
    %45 = tpu.matmul %43, %44, %cst_23 {dimension_numbers = #tpu.dot_dimension_numbers<[1], [0], [0], [1], [0, 0, 1, 1], [], []>} : vector<64x64xbf16>, vector<64x784xbf16>, vector<64x784xf32> -> vector<64x784xf32>
    %46 = vector.broadcast %3 : vector<1x784xf32> to vector<64x784xf32>
    %47 = arith.addf %45, %46 : vector<64x784xf32>
    %cst_24 = arith.constant 0.000000e+00 : f32
    %48 = vector.broadcast %cst_24 : f32 to vector<64x784xf32>
    %49 = arith.subf %48, %47 : vector<64x784xf32>
    %50 = math.exp %49 : vector<64x784xf32>
    %cst_25 = arith.constant 1.000000e+00 : f32
    %51 = vector.broadcast %cst_25 : f32 to vector<64x784xf32>
    %52 = arith.addf %51, %50 : vector<64x784xf32>
    %53 = tpu.reciprocal %52 {approx = true} : vector<64x784xf32> -> vector<64x784xf32>
    %cst_26 = arith.constant 1.000000e+00 : f32
    %54 = vector.broadcast %cst_26 : f32 to vector<64x784xf32>
    %55 = arith.minimumf %53, %54 : vector<64x784xf32>
    %56 = arith.truncf %55 : vector<64x784xf32> to vector<64x784xbf16>
    %c0_27 = arith.constant 0 : index
    %c0_28 = arith.constant 0 : index
    %57 = vector.load %arg8[%c0_27, %c0_28] : memref<64x784xbf16, #tpu.memory_space<vmem>>, vector<64x784xbf16>
    tpu.vector_store %arg8[%c0_27, %c0_28], %56 {strides = array<i32>} : memref<64x784xbf16, #tpu.memory_space<vmem>>, vector<64x784xbf16>,
    %58 = tpu.concatenate %16, %33, %36 in 1 : vector<64x8xf32>, vector<64x8xf32>, vector<64x8xf32> -> vector<64x24xf32>
    %c0_29 = arith.constant 0 : index
    %c0_30 = arith.constant 0 : index
    %59 = vector.load %arg9[%c0_29, %c0_30] : memref<64x24xf32, #tpu.memory_space<vmem>>, vector<64x24xf32>
    tpu.vector_store %arg9[%c0_29, %c0_30], %58 {strides = array<i32>} : memref<64x24xf32, #tpu.memory_space<vmem>>, vector<64x24xf32>,
    return
  }
  func.func @transform_0(%arg0: i32) -> (i32, i32) {
    %c0_i32 = arith.constant 0 : i32
    %c0_i32_0 = arith.constant 0 : i32
    return %arg0, %c0_i32 : i32, i32
  }
  func.func @transform_1(%arg0: i32) -> (i32, i32) {
    %c0_i32 = arith.constant 0 : i32
    %c0_i32_0 = arith.constant 0 : i32
    return %arg0, %c0_i32 : i32, i32
  }
  func.func @transform_2(%arg0: i32) -> (i32, i32) {
    %c0_i32 = arith.constant 0 : i32
    %c0_i32_0 = arith.constant 0 : i32
    %c0_i32_1 = arith.constant 0 : i32
    return %c0_i32, %c0_i32_0 : i32, i32
  }
  func.func @transform_3(%arg0: i32) -> (i32, i32) {
    %c0_i32 = arith.constant 0 : i32
    %c0_i32_0 = arith.constant 0 : i32
    %c0_i32_1 = arith.constant 0 : i32
    return %c0_i32, %c0_i32_0 : i32, i32
  }
  func.func @transform_4(%arg0: i32) -> (i32, i32) {
    %c0_i32 = arith.constant 0 : i32
    %c0_i32_0 = arith.constant 0 : i32
    %c0_i32_1 = arith.constant 0 : i32
    return %c0_i32, %c0_i32_0 : i32, i32
  }
  func.func @transform_5(%arg0: i32) -> (i32, i32) {
    %c0_i32 = arith.constant 0 : i32
    %c0_i32_0 = arith.constant 0 : i32
    %c0_i32_1 = arith.constant 0 : i32
    return %c0_i32, %c0_i32_0 : i32, i32
  }
  func.func @transform_6(%arg0: i32) -> (i32, i32) {
    %c0_i32 = arith.constant 0 : i32
    %c0_i32_0 = arith.constant 0 : i32
    %c0_i32_1 = arith.constant 0 : i32
    return %c0_i32, %c0_i32_0 : i32, i32
  }
  func.func @transform_7(%arg0: i32) -> (i32, i32) {
    %c0_i32 = arith.constant 0 : i32
    %c0_i32_0 = arith.constant 0 : i32
    return %arg0, %c0_i32 : i32, i32
  }
  func.func @transform_8(%arg0: i32) -> (i32, i32) {
    %c0_i32 = arith.constant 0 : i32
    %c0_i32_0 = arith.constant 0 : i32
    return %arg0, %c0_i32 : i32, i32
  }
}

</mosaic_0001>

<llo_original>
// kernel: base_vae_forward.1
$region0: #{base_vae_forward.1}
  #allocation0 [shape = 'u32[]', space=smem, size = 0x4, offset = 0x4, fixed_abs, tag = 'smem constant byte address 0x4 - core index']
  #allocation1 [shape = 'u32[72,128]{1,0:T(1,128)}', space=vmem, size = 0x9000, scoped, tag = 'internal scratch']
  %s0 = inlined_call_operand.vmem [shape: f32[256,784], index: 0, kind: input, shape index: {}]
  %s1 = inlined_call_operand.vmem [shape: f32[256,8], index: 1, kind: input, shape index: {}]
  %s2 = inlined_call_operand.vmem [shape: bf16[784,64], index: 2, kind: input, shape index: {}]
  %s3 = inlined_call_operand.vmem [shape: f32[64,16], index: 3, kind: input, shape index: {}]
  %s4 = inlined_call_operand.vmem [shape: f32[8,64], index: 4, kind: input, shape index: {}]
  %s5 = inlined_call_operand.vmem [shape: bf16[64,784], index: 5, kind: input, shape index: {}]
  %s6 = inlined_call_operand.vmem [shape: f32[1,1168], index: 6, kind: input, shape index: {}]
  %s7 = inlined_call_operand.vmem [shape: bf16[256,784], index: 7, kind: output, shape index: {0}]
  %s8 = inlined_call_operand.vmem [shape: f32[256,24], index: 8, kind: output, shape index: {1}]
  %9 = xla_tuple %s7, %s8
  %s10 = sld [smem:[#allocation0]]
  $region69: #{base_vae_forward.1} parent=0
    _
  %s12 = ssub.s32 1, %s10
  %s13 = scalar_select 0, %s12, %s10
  loop: start=0, step=1, limit=6
  $region2: #{base_vae_forward.1} parent=0 // loop_pre_header
    _
  $region3: #{base_vae_forward.1} parent=0 // loop_header
    %s15 = sphi 0, %s19
    %p16 = scmp.ge.s32.totalorder %s15, 6
    %s25 = sphi 0, %s27
    %s28 = sphi 0, %s25
    %s29 = sphi 0, %s28
    %s45 = sphi 0, %s29
    %s51 = sphi 0, %s53
    %s54 = sphi 0, %s51
    %s55 = sphi 0, %s54
    %s71 = sphi 0, %s55
    %s75 = sphi 0, %s75
    %s77 = sphi 0, %s75
    %s78 = sphi 0, %s77
    %s92 = sphi 0, %s78
    %s96 = sphi 0, %s96
    %s98 = sphi 0, %s96
    %s99 = sphi 0, %s98
    %s113 = sphi 0, %s99
    %s117 = sphi 0, %s117
    %s119 = sphi 0, %s117
    %s120 = sphi 0, %s119
    %s134 = sphi 0, %s120
    %s138 = sphi 0, %s138
    %s140 = sphi 0, %s138
    %s141 = sphi 0, %s140
    %s155 = sphi 0, %s141
    %s159 = sphi 0, %s159
    %s161 = sphi 0, %s159
    %s162 = sphi 0, %s161
    %s176 = sphi 0, %s162
    %s182 = sphi 0, %s184
    %s185 = sphi 0, %s182
    %s186 = sphi 0, %s185
    %s202 = sphi 0, %s186
    %s208 = sphi 0, %s210
    %s211 = sphi 0, %s208
    %s212 = sphi 0, %s211
    %s228 = sphi 0, %s212
  $region4: #{base_vae_forward.1} parent=0 // loop_header_branch
    %18 = sbr.rel (%p16) target = $region8
  $region5: #{base_vae_forward.1} parent=0 // loop_body
    %s20 = ssub.s32 %s15, 1
    %s21 = ssub.s32 %s15, 2
    %s22 = sadd.s32 %s15, 1
    %s23 = ssub.s32 %s15, %s22
    %p24 = scmp.eq.s32.totalorder %s23, 0
    %s26 = sadd.s32 %s25, 1
    %s27 = scalar_select %p24, %s25, %s26
    %p30 = pneg %p24
    %p31 = scmp.eq.s32.totalorder %s15, 3
    %p32 = por %p30, %p31
    %p33 = scmp.ne.s32.totalorder %s25, %s28
    %p34 = scmp.eq.s32.totalorder %s15, 0
    %p35 = por %p33, %p34
    %p36 = scmp.ne.s32.totalorder %s25, %s28
    %p37 = scmp.eq.s32.totalorder %s20, 3
    %p38 = por %p36, %p37
    %p39 = scmp.ne.s32.totalorder %s28, %s29
    %p40 = scmp.eq.s32.totalorder %s20, 0
    %p41 = por %p39, %p40
    %p42 = scmp.ne.s32.totalorder %s28, %s29
    %p43 = scmp.eq.s32.totalorder %s21, 3
    %p44 = por %p42, %p43
    %p46 = scmp.ne.s32.totalorder %s29, %s45
    %p47 = scmp.eq.s32.totalorder %s21, 0
    %p48 = por %p46, %p47
    %s49 = ssub.s32 %s15, %s22
    %p50 = scmp.eq.s32.totalorder %s49, 0
    %s52 = sadd.s32 %s51, 1
    %s53 = scalar_select %p50, %s51, %s52
    %p56 = pneg %p50
    %p57 = scmp.eq.s32.totalorder %s15, 3
    %p58 = por %p56, %p57
    %p59 = scmp.ne.s32.totalorder %s51, %s54
    %p60 = scmp.eq.s32.totalorder %s15, 0
    %p61 = por %p59, %p60
    %p62 = scmp.ne.s32.totalorder %s51, %s54
    %p63 = scmp.eq.s32.totalorder %s20, 3
    %p64 = por %p62, %p63
    %p65 = scmp.ne.s32.totalorder %s54, %s55
    %p66 = scmp.eq.s32.totalorder %s20, 0
    %p67 = por %p65, %p66
    %p68 = scmp.ne.s32.totalorder %s54, %s55
    %p69 = scmp.eq.s32.totalorder %s21, 3
    %p70 = por %p68, %p69
    %p72 = scmp.ne.s32.totalorder %s55, %s71
    %p73 = scmp.eq.s32.totalorder %s21, 0
    %p74 = por %p72, %p73
    %s76 = sadd.s32 %s75, 1
    %p79 = scmp.eq.s32.totalorder %s15, 3
    %p80 = scmp.ne.s32.totalorder %s75, %s77
    %p81 = scmp.eq.s32.totalorder %s15, 0
    %p82 = por %p80, %p81
    %p83 = scmp.ne.s32.totalorder %s75, %s77
    %p84 = scmp.eq.s32.totalorder %s20, 3
    %p85 = por %p83, %p84
    %p86 = scmp.ne.s32.totalorder %s77, %s78
    %p87 = scmp.eq.s32.totalorder %s20, 0
    %p88 = por %p86, %p87
    %p89 = scmp.ne.s32.totalorder %s77, %s78
    %p90 = scmp.eq.s32.totalorder %s21, 3
    %p91 = por %p89, %p90
    %p93 = scmp.ne.s32.totalorder %s78, %s92
    %p94 = scmp.eq.s32.totalorder %s21, 0
    %p95 = por %p93, %p94
    %s97 = sadd.s32 %s96, 1
    %p100 = scmp.eq.s32.totalorder %s15, 3
    %p101 = scmp.ne.s32.totalorder %s96, %s98
    %p102 = scmp.eq.s32.totalorder %s15, 0
    %p103 = por %p101, %p102
    %p104 = scmp.ne.s32.totalorder %s96, %s98
    %p105 = scmp.eq.s32.totalorder %s20, 3
    %p106 = por %p104, %p105
    %p107 = scmp.ne.s32.totalorder %s98, %s99
    %p108 = scmp.eq.s32.totalorder %s20, 0
    %p109 = por %p107, %p108
    %p110 = scmp.ne.s32.totalorder %s98, %s99
    %p111 = scmp.eq.s32.totalorder %s21, 3
    %p112 = por %p110, %p111
    %p114 = scmp.ne.s32.totalorder %s99, %s113
    %p115 = scmp.eq.s32.totalorder %s21, 0
    %p116 = por %p114, %p115
    %s118 = sadd.s32 %s117, 1
    %p121 = scmp.eq.s32.totalorder %s15, 3
    %p122 = scmp.ne.s32.totalorder %s117, %s119
    %p123 = scmp.eq.s32.totalorder %s15, 0
    %p124 = por %p122, %p123
    %p125 = scmp.ne.s32.totalorder %s117, %s119
    %p126 = scmp.eq.s32.totalorder %s20, 3
    %p127 = por %p125, %p126
    %p128 = scmp.ne.s32.totalorder %s119, %s120
    %p129 = scmp.eq.s32.totalorder %s20, 0
    %p130 = por %p128, %p129
    %p131 = scmp.ne.s32.totalorder %s119, %s120
    %p132 = scmp.eq.s32.totalorder %s21, 3
    %p133 = por %p131, %p132
    %p135 = scmp.ne.s32.totalorder %s120, %s134
    %p136 = scmp.eq.s32.totalorder %s21, 0
    %p137 = por %p135, %p136
    %s139 = sadd.s32 %s138, 1
    %p142 = scmp.eq.s32.totalorder %s15, 3
    %p143 = scmp.ne.s32.totalorder %s138, %s140
    %p144 = scmp.eq.s32.totalorder %s15, 0
    %p145 = por %p143, %p144
    %p146 = scmp.ne.s32.totalorder %s138, %s140
    %p147 = scmp.eq.s32.totalorder %s20, 3
    %p148 = por %p146, %p147
    %p149 = scmp.ne.s32.totalorder %s140, %s141
    %p150 = scmp.eq.s32.totalorder %s20, 0
    %p151 = por %p149, %p150
    %p152 = scmp.ne.s32.totalorder %s140, %s141
    %p153 = scmp.eq.s32.totalorder %s21, 3
    %p154 = por %p152, %p153
    %p156 = scmp.ne.s32.totalorder %s141, %s155
    %p157 = scmp.eq.s32.totalorder %s21, 0
    %p158 = por %p156, %p157
    %s160 = sadd.s32 %s159, 1
    %p163 = scmp.eq.s32.totalorder %s15, 3
    %p164 = scmp.ne.s32.totalorder %s159, %s161
    %p165 = scmp.eq.s32.totalorder %s15, 0
    %p166 = por %p164, %p165
    %p167 = scmp.ne.s32.totalorder %s159, %s161
    %p168 = scmp.eq.s32.totalorder %s20, 3
    %p169 = por %p167, %p168
    %p170 = scmp.ne.s32.totalorder %s161, %s162
    %p171 = scmp.eq.s32.totalorder %s20, 0
    %p172 = por %p170, %p171
    %p173 = scmp.ne.s32.totalorder %s161, %s162
    %p174 = scmp.eq.s32.totalorder %s21, 3
    %p175 = por %p173, %p174
    %p177 = scmp.ne.s32.totalorder %s162, %s176
    %p178 = scmp.eq.s32.totalorder %s21, 0
    %p179 = por %p177, %p178
    %s180 = ssub.s32 %s15, %s22
    %p181 = scmp.eq.s32.totalorder %s180, 0
    %s183 = sadd.s32 %s182, 1
    %s184 = scalar_select %p181, %s182, %s183
    %p187 = pneg %p181
    %p188 = scmp.eq.s32.totalorder %s15, 3
    %p189 = por %p187, %p188
    %p190 = scmp.ne.s32.totalorder %s182, %s185
    %p191 = scmp.eq.s32.totalorder %s15, 0
    %p192 = por %p190, %p191
    %p193 = scmp.ne.s32.totalorder %s182, %s185
    %p194 = scmp.eq.s32.totalorder %s20, 3
    %p195 = por %p193, %p194
    %p196 = scmp.ne.s32.totalorder %s185, %s186
    %p197 = scmp.eq.s32.totalorder %s20, 0
    %p198 = por %p196, %p197
    %p199 = scmp.ne.s32.totalorder %s185, %s186
    %p200 = scmp.eq.s32.totalorder %s21, 3
    %p201 = por %p199, %p200
    %p203 = scmp.ne.s32.totalorder %s186, %s202
    %p204 = scmp.eq.s32.totalorder %s21, 0
    %p205 = por %p203, %p204
    %s206 = ssub.s32 %s15, %s22
    %p207 = scmp.eq.s32.totalorder %s206, 0
    %s209 = sadd.s32 %s208, 1
    %s210 = scalar_select %p207, %s208, %s209
    %p213 = pneg %p207
    %p214 = scmp.eq.s32.totalorder %s15, 3
    %p215 = por %p213, %p214
    %p216 = scmp.ne.s32.totalorder %s208, %s211
    %p217 = scmp.eq.s32.totalorder %s15, 0
    %p218 = por %p216, %p217
    %p219 = scmp.ne.s32.totalorder %s208, %s211
    %p220 = scmp.eq.s32.totalorder %s20, 3
    %p221 = por %p219, %p220
    %p222 = scmp.ne.s32.totalorder %s211, %s212
    %p223 = scmp.eq.s32.totalorder %s20, 0
    %p224 = por %p222, %p223
    %p225 = scmp.ne.s32.totalorder %s211, %s212
    %p226 = scmp.eq.s32.totalorder %s21, 3
    %p227 = por %p225, %p226
    %p229 = scmp.ne.s32.totalorder %s212, %s228
    %p230 = scmp.eq.s32.totalorder %s21, 0
    %p231 = por %p229, %p230
    %p232 = scmp.le.s32.totalorder 1, %s15
    %p233 = scmp.lt.s32.totalorder %s15, 5
    %p234 = pnand %p232, %p233
    %p235 = pneg %p234
    // Predicated region
    $region9: #{base_vae_forward.1} parent=5 // pred_check
      _
    $region10: #{base_vae_forward.1} parent=5 // pred_check_branch
      %237 = sbr.rel (%p234) target = $region12
    $region11: #{base_vae_forward.1} parent=5 // pred_region
      %s238 = ssub.s32 %s15, 1
      // Predicated region
      $region13: #{base_vae_forward.1} parent=11 // pred_check
        %p239 = pneg %p88
      $region14: #{base_vae_forward.1} parent=11 // pred_check_branch
        %241 = sbr.rel (%p239) target = $region16
      $region15: #{base_vae_forward.1} parent=11 // pred_region
        _
      $region16: #{base_vae_forward.1} parent=11 // pred_fallthru
        _
      // Predicated region
      $region17: #{base_vae_forward.1} parent=11 // pred_check
        %p242 = pneg %p109
      $region18: #{base_vae_forward.1} parent=11 // pred_check_branch
        %244 = sbr.rel (%p242) target = $region20
      $region19: #{base_vae_forward.1} parent=11 // pred_region
        _
      $region20: #{base_vae_forward.1} parent=11 // pred_fallthru
        _
      // Predicated region
      $region21: #{base_vae_forward.1} parent=11 // pred_check
        %p245 = pneg %p130
      $region22: #{base_vae_forward.1} parent=11 // pred_check_branch
        %247 = sbr.rel (%p245) target = $region24
      $region23: #{base_vae_forward.1} parent=11 // pred_region
        _
      $region24: #{base_vae_forward.1} parent=11 // pred_fallthru
        _
      // Predicated region
      $region25: #{base_vae_forward.1} parent=11 // pred_check
        %p248 = pneg %p151
      $region26: #{base_vae_forward.1} parent=11 // pred_check_branch
        %250 = sbr.rel (%p248) target = $region28
      $region27: #{base_vae_forward.1} parent=11 // pred_region
        _
      $region28: #{base_vae_forward.1} parent=11 // pred_fallthru
        _
      // Predicated region
      $region29: #{base_vae_forward.1} parent=11 // pred_check
        %p251 = pneg %p172
      $region30: #{base_vae_forward.1} parent=11 // pred_check_branch
        %253 = sbr.rel (%p251) target = $region32
      $region31: #{base_vae_forward.1} parent=11 // pred_region
        _
      $region32: #{base_vae_forward.1} parent=11 // pred_fallthru
        _
    $region12: #{base_vae_forward.1} parent=5 // pred_fallthru
      _
    %p254 = scmp.lt.s32.totalorder %s15, 4
    // Predicated region
    $region33: #{base_vae_forward.1} parent=5 // pred_check
      %p255 = pneg %p254
    $region34: #{base_vae_forward.1} parent=5 // pred_check_branch
      %257 = sbr.rel (%p255) target = $region36
    $region35: #{base_vae_forward.1} parent=5 // pred_region
      // Predicated region
      $region37: #{base_vae_forward.1} parent=35 // pred_check
        %p258 = pneg %p35
      $region38: #{base_vae_forward.1} parent=35 // pred_check_branch
        %260 = sbr.rel (%p258) target = $region40
      $region39: #{base_vae_forward.1} parent=35 // pred_region
        %s261 = smul.u32 8, %s15
        %p262 = scmp.lt.s32.totalorder %s261, 31
        %s263 = scalar_select %p262, %s261, 31
        %s264 = smul.addr %s263, 7
        %s265 = smul.addr %s264, 8
        %s266 = scalar_lea.vmem %s0, %s265
        %s267 = smul.u32 8, %s15
      $region40: #{base_vae_forward.1} parent=35 // pred_fallthru
        _
      // Predicated region
      $region41: #{base_vae_forward.1} parent=35 // pred_check
        %p268 = pneg %p61
      $region42: #{base_vae_forward.1} parent=35 // pred_check_branch
        %270 = sbr.rel (%p268) target = $region44
      $region43: #{base_vae_forward.1} parent=35 // pred_region
        %s271 = smul.u32 8, %s15
        %p272 = scmp.lt.s32.totalorder %s271, 31
        %s273 = scalar_select %p272, %s271, 31
        %s274 = smul.addr %s273, 8
        %s275 = scalar_lea.vmem %s1, %s274
        %s276 = smul.u32 8, %s15
      $region44: #{base_vae_forward.1} parent=35 // pred_fallthru
        _
    $region36: #{base_vae_forward.1} parent=5 // pred_fallthru
      _
    %p277 = scmp.le.s32.totalorder 1, %s15
    %p278 = scmp.lt.s32.totalorder %s15, 5
    %p279 = pnand %p277, %p278
    %p280 = pneg %p279
    // Predicated region
    $region45: #{base_vae_forward.1} parent=5 // pred_check
      _
    $region46: #{base_vae_forward.1} parent=5 // pred_check_branch
      %282 = sbr.rel (%p279) target = $region48
    $region47: #{base_vae_forward.1} parent=5 // pred_region
      %s283 = ssub.s32 %s15, 1
      %s284 = smul.u32 8, %s20
      %p285 = scmp.lt.s32.totalorder %s284, 31
      %s286 = scalar_select %p285, %s284, 31
      %s287 = smul.addr %s286, 7
      %s288 = smul.addr %s287, 8
      %s289 = scalar_lea.vmem %s0, %s288
      %p290 = pneg %p41
      %p291 = pneg %p38
      %s292 = smul.u32 8, %s20
      %p293 = scmp.lt.s32.totalorder %s292, 31
      %s294 = scalar_select %p293, %s292, 31
      %s295 = smul.addr %s294, 8
      %s296 = scalar_lea.vmem %s1, %s295
      %p297 = pneg %p67
      %p298 = pneg %p64
      %p299 = pneg %p88
      %p300 = pneg %p85
      %p301 = pneg %p109
      %p302 = pneg %p106
      %p303 = pneg %p130
      %p304 = pneg %p127
      %p305 = pneg %p151
      %p306 = pneg %p148
      %p307 = pneg %p172
      %p308 = pneg %p169
      %p309 = pneg %p198
      %p310 = pneg %p195
      %s311 = smul.u32 8, %s20
      %p312 = scmp.lt.s32.totalorder %s311, 31
      %s313 = scalar_select %p312, %s311, 31
      %s314 = smul.addr %s313, 7
      %s315 = smul.addr %s314, 4
      %s316 = scalar_lea.vmem %s7, %s315
      %p317 = pneg %p224
      %p318 = pneg %p221
      %s319 = smul.u32 8, %s20
      %p320 = scmp.lt.s32.totalorder %s319, 31
      %s321 = scalar_select %p320, %s319, 31
      %s322 = smul.addr %s321, 8
      %s323 = scalar_lea.vmem %s8, %s322
      %s324 = smul.u32 8, %s20
      %p325 = scmp.lt.s32.totalorder %s324, 31
      %s326 = scalar_select %p325, %s324, 31
      %s327 = smul.addr %s326, 7
      %s328 = smul.addr %s327, 8
      %s329 = scalar_lea.vmem %s0, %s328
      %s330 = smul.u32 8, %s20
      %s331 = smul.u32 8, %s20
      %p332 = scmp.lt.s32.totalorder %s331, 31
      %s333 = scalar_select %p332, %s331, 31
      %s334 = smul.addr %s333, 8
      %s335 = scalar_lea.vmem %s1, %s334
      %s336 = smul.u32 8, %s20
      %s337 = smul.u32 8, %s20
      %p338 = scmp.lt.s32.totalorder %s337, 31
      %s339 = scalar_select %p338, %s337, 31
      %s340 = smul.addr %s339, 7
      %s341 = smul.addr %s340, 4
      %s342 = scalar_lea.vmem %s7, %s341
      %s343 = smul.u32 8, %s20
      %s344 = smul.u32 8, %s20
      %p345 = scmp.lt.s32.totalorder %s344, 31
      %s346 = scalar_select %p345, %s344, 31
      %s347 = smul.addr %s346, 8
      %s348 = scalar_lea.vmem %s8, %s347
      %s349 = smul.u32 8, %s20
      %v351 = vld [vmem:[%s6] sm:$0x1]
      %v352 = vld [vmem:[%s6 + $0x1] sm:$0x1]
      %v353 = vld [vmem:[%s6 + $0x2] sm:$0x1]
      %v354 = vld [vmem:[%s6 + $0x3] sm:$0x7f]
      %v355 = vld [vmem:[%s329] sm:$0xff]
      %v356 = vld [vmem:[%s329 + $0x8] sm:$0xff]
      %v357 = vld [vmem:[%s329 + $0x10] sm:$0xff]
      %v358 = vld [vmem:[%s329 + $0x18] sm:$0xff]
      %v359 = vld [vmem:[%s329 + $0x20] sm:$0xff]
      %v360 = vld [vmem:[%s329 + $0x28] sm:$0xff]
      %v361 = vld [vmem:[%s329 + $0x30] sm:$0xff]
      %v362 = vld [vmem:[%s329 + $0x38] sm:$0xff]
      %v363 = vld [vmem:[%s329 + $0x40] sm:$0xff]
      %v364 = vld [vmem:[%s329 + $0x48] sm:$0xff]
      %v365 = vld [vmem:[%s329 + $0x50] sm:$0xff]
      %v366 = vld [vmem:[%s329 + $0x58] sm:$0xff]
      %v367 = vld [vmem:[%s329 + $0x60] sm:$0xff]
      %v368 = vld [vmem:[%s329 + $0x68] sm:$0xff]
      %v369 = vld [vmem:[%s329 + $0x70] sm:$0xff]
      %v370 = vld [vmem:[%s329 + $0x78] sm:$0xff]
      %v371 = vld [vmem:[%s329 + $0x80] sm:$0xff]
      %v372 = vld [vmem:[%s329 + $0x88] sm:$0xff]
      %v373 = vld [vmem:[%s329 + $0x90] sm:$0xff]
      %v374 = vld [vmem:[%s329 + $0x98] sm:$0xff]
      %v375 = vld [vmem:[%s329 + $0xa0] sm:$0xff]
      %v376 = vld [vmem:[%s329 + $0xa8] sm:$0xff]
      %v377 = vld [vmem:[%s329 + $0xb0] sm:$0xff]
      %v378 = vld [vmem:[%s329 + $0xb8] sm:$0xff]
      %v379 = vld [vmem:[%s329 + $0xc0] sm:$0xff]
      %v380 = vld [vmem:[%s329 + $0xc8] sm:$0xff]
      %v381 = vld [vmem:[%s329 + $0xd0] sm:$0xff]
      %v382 = vld [vmem:[%s329 + $0xd8] sm:$0xff]
      %v383 = vld [vmem:[%s329 + $0xe0] sm:$0xff]
      %v384 = vld [vmem:[%s329 + $0xe8] sm:$0xff]
      %v385 = vld [vmem:[%s329 + $0xf0] sm:$0xff]
      %v386 = vld [vmem:[%s329 + $0xf8] sm:$0xff]
      %v387 = vld [vmem:[%s329 + $0x100] sm:$0xff]
      %v388 = vld [vmem:[%s329 + $0x108] sm:$0xff]
      %v389 = vld [vmem:[%s329 + $0x110] sm:$0xff]
      %v390 = vld [vmem:[%s329 + $0x118] sm:$0xff]
      %v391 = vld [vmem:[%s329 + $0x120] sm:$0xff]
      %v392 = vld [vmem:[%s329 + $0x128] sm:$0xff]
      %v393 = vld [vmem:[%s329 + $0x130] sm:$0xff]
      %v394 = vld [vmem:[%s329 + $0x138] sm:$0xff]
      %v395 = vld [vmem:[%s329 + $0x140] sm:$0xff]
      %v396 = vld [vmem:[%s329 + $0x148] sm:$0xff]
      %v397 = vld [vmem:[%s329 + $0x150] sm:$0xff]
      %v398 = vld [vmem:[%s329 + $0x158] sm:$0xff]
      %v399 = vld [vmem:[%s329 + $0x160] sm:$0xff]
      %v400 = vld [vmem:[%s329 + $0x168] sm:$0xff]
      %v401 = vld [vmem:[%s329 + $0x170] sm:$0xff]
      %v402 = vld [vmem:[%s329 + $0x178] sm:$0xff]
      %v403 = vld [vmem:[%s329 + $0x180] sm:$0xff]
      %v404 = vld [vmem:[%s329 + $0x188] sm:$0xff]
      %v405 = vld [vmem:[%s329 + $0x190] sm:$0xff]
      %v406 = vld [vmem:[%s329 + $0x198] sm:$0xff]
      %v407 = vld [vmem:[%s329 + $0x1a0] sm:$0xff]
      %v408 = vld [vmem:[%s329 + $0x1a8] sm:$0xff]
      %v409 = vld [vmem:[%s329 + $0x1b0] sm:$0xff]
      %v410 = vld [vmem:[%s329 + $0x1b8] sm:$0xff]
      %v411 = vpack.c.bf16 %v362, %v355
      %v412 = vpack.c.bf16 %v363, %v356
      %v413 = vpack.c.bf16 %v364, %v357
      %v414 = vpack.c.bf16 %v365, %v358
      %v415 = vpack.c.bf16 %v366, %v359
      %v416 = vpack.c.bf16 %v367, %v360
      %v417 = vpack.c.bf16 %v368, %v361
      %v418 = vpack.c.bf16 %v376, %v369
      %v419 = vpack.c.bf16 %v377, %v370
      %v420 = vpack.c.bf16 %v378, %v371
      %v421 = vpack.c.bf16 %v379, %v372
      %v422 = vpack.c.bf16 %v380, %v373
      %v423 = vpack.c.bf16 %v381, %v374
      %v424 = vpack.c.bf16 %v382, %v375
      %v425 = vpack.c.bf16 %v390, %v383
      %v426 = vpack.c.bf16 %v391, %v384
      %v427 = vpack.c.bf16 %v392, %v385
      %v428 = vpack.c.bf16 %v393, %v386
      %v429 = vpack.c.bf16 %v394, %v387
      %v430 = vpack.c.bf16 %v395, %v388
      %v431 = vpack.c.bf16 %v396, %v389
      %v432 = vpack.c.bf16 %v404, %v397
      %v433 = vpack.c.bf16 %v405, %v398
      %v434 = vpack.c.bf16 %v406, %v399
      %v435 = vpack.c.bf16 %v407, %v400
      %v436 = vpack.c.bf16 %v408, %v401
      %v437 = vpack.c.bf16 %v409, %v402
      %v438 = vpack.c.bf16 %v410, %v403
      %v439 = vld [vmem:[%s2] sm:$0xf]
      %v440 = vld [vmem:[%s2 + $0x4] sm:$0xf]
      %v441 = vld [vmem:[%s2 + $0x8] sm:$0xf]
      %v442 = vld [vmem:[%s2 + $0xc] sm:$0xf]
      %v443 = vld [vmem:[%s2 + $0x10] sm:$0xf]
      %v444 = vld [vmem:[%s2 + $0x14] sm:$0xf]
      %v445 = vld [vmem:[%s2 + $0x18] sm:$0xf]
      %v446 = vld [vmem:[%s2 + $0x1c] sm:$0xf]
      %v447 = vld [vmem:[%s2 + $0x20] sm:$0xf]
      %v448 = vld [vmem:[%s2 + $0x24] sm:$0xf]
      %v449 = vld [vmem:[%s2 + $0x28] sm:$0xf]
      %v450 = vld [vmem:[%s2 + $0x2c] sm:$0xf]
      %v451 = vld [vmem:[%s2 + $0x30] sm:$0xf]
      %v452 = vld [vmem:[%s2 + $0x34] sm:$0xf]
      %v453 = vld [vmem:[%s2 + $0x38] sm:$0xf]
      %v454 = vld [vmem:[%s2 + $0x3c] sm:$0xf]
      %v455 = vld [vmem:[%s2 + $0x40] sm:$0xf]
      %v456 = vld [vmem:[%s2 + $0x44] sm:$0xf]
      %v457 = vld [vmem:[%s2 + $0x48] sm:$0xf]
      %v458 = vld [vmem:[%s2 + $0x4c] sm:$0xf]
      %v459 = vld [vmem:[%s2 + $0x50] sm:$0xf]
      %v460 = vld [vmem:[%s2 + $0x54] sm:$0xf]
      %v461 = vld [vmem:[%s2 + $0x58] sm:$0xf]
      %v462 = vld [vmem:[%s2 + $0x5c] sm:$0xf]
      %v463 = vld [vmem:[%s2 + $0x60] sm:$0xf]
      %v464 = vld [vmem:[%s2 + $0x64] sm:$0xf]
      %v465 = vld [vmem:[%s2 + $0x68] sm:$0xf]
      %v466 = vld [vmem:[%s2 + $0x6c] sm:$0xf]
      %v467 = vld [vmem:[%s2 + $0x70] sm:$0xf]
      %v468 = vld [vmem:[%s2 + $0x74] sm:$0xf]
      %v469 = vld [vmem:[%s2 + $0x78] sm:$0xf]
      %v470 = vld [vmem:[%s2 + $0x7c] sm:$0xf]
      %v471 = vld [vmem:[%s2 + $0x80] sm:$0xf]
      %v472 = vld [vmem:[%s2 + $0x84] sm:$0xf]
      %v473 = vld [vmem:[%s2 + $0x88] sm:$0xf]
      %v474 = vld [vmem:[%s2 + $0x8c] sm:$0xf]
      %v475 = vld [vmem:[%s2 + $0x90] sm:$0xf]
      %v476 = vld [vmem:[%s2 + $0x94] sm:$0xf]
      %v477 = vld [vmem:[%s2 + $0x98] sm:$0xf]
      %v478 = vld [vmem:[%s2 + $0x9c] sm:$0xf]
      %v479 = vld [vmem:[%s2 + $0xa0] sm:$0xf]
      %v480 = vld [vmem:[%s2 + $0xa4] sm:$0xf]
      %v481 = vld [vmem:[%s2 + $0xa8] sm:$0xf]
      %v482 = vld [vmem:[%s2 + $0xac] sm:$0xf]
      %v483 = vld [vmem:[%s2 + $0xb0] sm:$0xf]
      %v484 = vld [vmem:[%s2 + $0xb4] sm:$0xf]
      %v485 = vld [vmem:[%s2 + $0xb8] sm:$0xf]
      %v486 = vld [vmem:[%s2 + $0xbc] sm:$0xf]
      %v487 = vld [vmem:[%s2 + $0xc0] sm:$0xf]
      %v488 = vld [vmem:[%s2 + $0xc4] sm:$0xf]
      %v489 = vld [vmem:[%s2 + $0xc8] sm:$0xf]
      %v490 = vld [vmem:[%s2 + $0xcc] sm:$0xf]
      %v491 = vld [vmem:[%s2 + $0xd0] sm:$0xf]
      %v492 = vld [vmem:[%s2 + $0xd4] sm:$0xf]
      %v493 = vld [vmem:[%s2 + $0xd8] sm:$0xf]
      %v494 = vld [vmem:[%s2 + $0xdc] sm:$0xf]
      %v495 = vld [vmem:[%s2 + $0xe0] sm:$0xf]
      %v496 = vld [vmem:[%s2 + $0xe4] sm:$0xf]
      %v497 = vld [vmem:[%s2 + $0xe8] sm:$0xf]
      %v498 = vld [vmem:[%s2 + $0xec] sm:$0xf]
      %v499 = vld [vmem:[%s2 + $0xf0] sm:$0xf]
      %v500 = vld [vmem:[%s2 + $0xf4] sm:$0xf]
      %v501 = vld [vmem:[%s2 + $0xf8] sm:$0xf]
      %v502 = vld [vmem:[%s2 + $0xfc] sm:$0xf]
      %v503 = vld [vmem:[%s2 + $0x100] sm:$0xf]
      %v504 = vld [vmem:[%s2 + $0x104] sm:$0xf]
      %v505 = vld [vmem:[%s2 + $0x108] sm:$0xf]
      %v506 = vld [vmem:[%s2 + $0x10c] sm:$0xf]
      %v507 = vld [vmem:[%s2 + $0x110] sm:$0xf]
      %v508 = vld [vmem:[%s2 + $0x114] sm:$0xf]
      %v509 = vld [vmem:[%s2 + $0x118] sm:$0xf]
      %v510 = vld [vmem:[%s2 + $0x11c] sm:$0xf]
      %v511 = vld [vmem:[%s2 + $0x120] sm:$0xf]
      %v512 = vld [vmem:[%s2 + $0x124] sm:$0xf]
      %v513 = vld [vmem:[%s2 + $0x128] sm:$0xf]
      %v514 = vld [vmem:[%s2 + $0x12c] sm:$0xf]
      %v515 = vld [vmem:[%s2 + $0x130] sm:$0xf]
      %v516 = vld [vmem:[%s2 + $0x134] sm:$0xf]
      %v517 = vld [vmem:[%s2 + $0x138] sm:$0xf]
      %v518 = vld [vmem:[%s2 + $0x13c] sm:$0xf]
      %v519 = vld [vmem:[%s2 + $0x140] sm:$0xf]
      %v520 = vld [vmem:[%s2 + $0x144] sm:$0xf]
      %v521 = vld [vmem:[%s2 + $0x148] sm:$0xf]
      %v522 = vld [vmem:[%s2 + $0x14c] sm:$0xf]
      %v523 = vld [vmem:[%s2 + $0x150] sm:$0xf]
      %v524 = vld [vmem:[%s2 + $0x154] sm:$0xf]
      %v525 = vld [vmem:[%s2 + $0x158] sm:$0xf]
      %v526 = vld [vmem:[%s2 + $0x15c] sm:$0xf]
      %v527 = vld [vmem:[%s2 + $0x160] sm:$0xf]
      %v528 = vld [vmem:[%s2 + $0x164] sm:$0xf]
      %v529 = vld [vmem:[%s2 + $0x168] sm:$0xf]
      %v530 = vld [vmem:[%s2 + $0x16c] sm:$0xf]
      %v531 = vld [vmem:[%s2 + $0x170] sm:$0xf]
      %v532 = vld [vmem:[%s2 + $0x174] sm:$0xf]
      %v533 = vld [vmem:[%s2 + $0x178] sm:$0xf]
      %v534 = vld [vmem:[%s2 + $0x17c] sm:$0xf]
      %v535 = vld [vmem:[%s2 + $0x180] sm:$0xf]
      %v536 = vld [vmem:[%s2 + $0x184] sm:$0xf]
      %v538 = vperm.slane %v351, 0
      %v638 = vunpack.c.l.b16 %v439
      %v639 = vunpack.c.l.b16 %v440
      %v640 = vunpack.c.l.b16 %v441
      %v641 = vunpack.c.l.b16 %v442
      %v642 = vunpack.c.l.b16 %v443
      %v643 = vunpack.c.l.b16 %v444
      %v644 = vunpack.c.l.b16 %v445
      %v645 = vunpack.c.l.b16 %v446
      %v646 = vunpack.c.l.b16 %v447
      %v647 = vunpack.c.l.b16 %v448
      %v648 = vunpack.c.l.b16 %v449
      %v649 = vunpack.c.l.b16 %v450
      %v650 = vunpack.c.l.b16 %v451
      %v651 = vunpack.c.l.b16 %v452
      %v652 = vunpack.c.l.b16 %v453
      %v653 = vunpack.c.l.b16 %v454
      %v654 = vunpack.c.l.b16 %v455
      %v655 = vunpack.c.l.b16 %v456
      %v656 = vunpack.c.l.b16 %v457
      %v657 = vunpack.c.l.b16 %v458
      %v658 = vunpack.c.l.b16 %v459
      %v659 = vunpack.c.l.b16 %v460
      %v660 = vunpack.c.l.b16 %v461
      %v661 = vunpack.c.l.b16 %v462
      %v662 = vunpack.c.l.b16 %v463
      %v663 = vunpack.c.l.b16 %v464
      %v664 = vunpack.c.l.b16 %v465
      %v665 = vunpack.c.l.b16 %v466
      %v666 = vunpack.c.l.b16 %v467
      %v667 = vunpack.c.l.b16 %v468
      %v668 = vunpack.c.l.b16 %v469
      %v669 = vunpack.c.l.b16 %v470
      %v670 = vunpack.c.l.b16 %v471
      %v671 = vunpack.c.l.b16 %v472
      %v672 = vunpack.c.l.b16 %v473
      %v673 = vunpack.c.l.b16 %v474
      %v674 = vunpack.c.l.b16 %v475
      %v675 = vunpack.c.l.b16 %v476
      %v676 = vunpack.c.l.b16 %v477
      %v677 = vunpack.c.l.b16 %v478
      %v678 = vunpack.c.l.b16 %v479
      %v679 = vunpack.c.l.b16 %v480
      %v680 = vunpack.c.l.b16 %v481
      %v681 = vunpack.c.l.b16 %v482
      %v682 = vunpack.c.l.b16 %v483
      %v683 = vunpack.c.l.b16 %v484
      %v684 = vunpack.c.l.b16 %v485
      %v685 = vunpack.c.l.b16 %v486
      %v686 = vunpack.c.l.b16 %v487
      %v687 = vunpack.c.l.b16 %v488
      %v688 = vunpack.c.l.b16 %v489
      %v689 = vunpack.c.l.b16 %v490
      %v690 = vunpack.c.l.b16 %v491
      %v691 = vunpack.c.l.b16 %v492
      %v692 = vunpack.c.l.b16 %v493
      %v693 = vunpack.c.l.b16 %v494
      %v694 = vunpack.c.l.b16 %v495
      %v695 = vunpack.c.l.b16 %v496
      %v696 = vunpack.c.l.b16 %v497
      %v697 = vunpack.c.l.b16 %v498
      %v698 = vunpack.c.l.b16 %v499
      %v699 = vunpack.c.l.b16 %v500
      %v700 = vunpack.c.l.b16 %v501
      %v701 = vunpack.c.l.b16 %v502
      %v702 = vunpack.c.l.b16 %v503
      %v703 = vunpack.c.l.b16 %v504
      %v704 = vunpack.c.l.b16 %v505
      %v705 = vunpack.c.l.b16 %v506
      %v706 = vunpack.c.l.b16 %v507
      %v707 = vunpack.c.l.b16 %v508
      %v708 = vunpack.c.l.b16 %v509
      %v709 = vunpack.c.l.b16 %v510
      %v710 = vunpack.c.l.b16 %v511
      %v711 = vunpack.c.l.b16 %v512
      %v712 = vunpack.c.l.b16 %v513
      %v713 = vunpack.c.l.b16 %v514
      %v714 = vunpack.c.l.b16 %v515
      %v715 = vunpack.c.l.b16 %v516
      %v716 = vunpack.c.l.b16 %v517
      %v717 = vunpack.c.l.b16 %v518
      %v718 = vunpack.c.l.b16 %v519
      %v719 = vunpack.c.l.b16 %v520
      %v720 = vunpack.c.l.b16 %v521
      %v721 = vunpack.c.l.b16 %v522
      %v722 = vunpack.c.l.b16 %v523
      %v723 = vunpack.c.l.b16 %v524
      %v724 = vunpack.c.l.b16 %v525
      %v725 = vunpack.c.l.b16 %v526
      %v726 = vunpack.c.l.b16 %v527
      %v727 = vunpack.c.l.b16 %v528
      %v728 = vunpack.c.l.b16 %v529
      %v729 = vunpack.c.l.b16 %v530
      %v730 = vunpack.c.l.b16 %v531
      %v731 = vunpack.c.l.b16 %v532
      %v732 = vunpack.c.l.b16 %v533
      %v733 = vunpack.c.l.b16 %v534
      %v734 = vunpack.c.l.b16 %v535
      %v735 = vunpack.c.l.b16 %v536
      %v736 = vpack.c.b16 %v639, %v638
      %v737 = vpack.c.b16 %v641, %v640
      %v738 = vpack.c.b16 %v643, %v642
      %v739 = vpack.c.b16 %v645, %v644
      %v740 = vpack.c.b16 %v647, %v646
      %v741 = vpack.c.b16 %v649, %v648
      %v742 = vpack.c.b16 %v651, %v650
      %v743 = vpack.c.b16 %v653, %v652
      %v744 = vpack.c.b16 %v655, %v654
      %v745 = vpack.c.b16 %v657, %v656
      %v746 = vpack.c.b16 %v659, %v658
      %v747 = vpack.c.b16 %v661, %v660
      %v748 = vpack.c.b16 %v663, %v662
      %v749 = vpack.c.b16 %v665, %v664
      %v750 = vpack.c.b16 %v667, %v666
      %v751 = vpack.c.b16 %v669, %v668
      %v752 = vpack.c.b16 %v671, %v670
      %v753 = vpack.c.b16 %v673, %v672
      %v754 = vpack.c.b16 %v675, %v674
      %v755 = vpack.c.b16 %v677, %v676
      %v756 = vpack.c.b16 %v679, %v678
      %v757 = vpack.c.b16 %v681, %v680
      %v758 = vpack.c.b16 %v683, %v682
      %v759 = vpack.c.b16 %v685, %v684
      %v760 = vpack.c.b16 %v687, %v686
      %v761 = vpack.c.b16 %v689, %v688
      %v762 = vpack.c.b16 %v691, %v690
      %v763 = vpack.c.b16 %v693, %v692
      %v764 = vpack.c.b16 %v695, %v694
      %v765 = vpack.c.b16 %v697, %v696
      %v766 = vpack.c.b16 %v699, %v698
      %v767 = vpack.c.b16 %v701, %v700
      %v768 = vpack.c.b16 %v703, %v702
      %v769 = vpack.c.b16 %v705, %v704
      %v770 = vpack.c.b16 %v707, %v706
      %v771 = vpack.c.b16 %v709, %v708
      %v772 = vpack.c.b16 %v711, %v710
      %v773 = vpack.c.b16 %v713, %v712
      %v774 = vpack.c.b16 %v715, %v714
      %v775 = vpack.c.b16 %v717, %v716
      %v776 = vpack.c.b16 %v719, %v718
      %v777 = vpack.c.b16 %v721, %v720
      %v778 = vpack.c.b16 %v723, %v722
      %v779 = vpack.c.b16 %v725, %v724
      %v780 = vpack.c.b16 %v727, %v726
      %v781 = vpack.c.b16 %v729, %v728
      %v782 = vpack.c.b16 %v731, %v730
      %v783 = vpack.c.b16 %v733, %v732
      %v784 = vpack.c.b16 %v735, %v734
      %vm834 = vcmask 130048
      %v836 = vsel %vm834, %v417, 0
      %v839 = vsel %vm834, %v424, 0
      %v842 = vsel %vm834, %v431, 0
      %v845 = vsel %vm834, %v438, 0
      %847 = vmatpush.bf16.msra.mxu0 %v743
      %848 = vmatpush.bf16.msra.mxu0 %v742
      %849 = vmatpush.bf16.msra.mxu0 %v741
      %850 = vmatpush.bf16.msra.mxu0 %v740
      %851 = vmatpush.bf16.msra.mxu0 %v739
      %852 = vmatpush.bf16.msra.mxu0 %v738
      %853 = vmatpush.bf16.msra.mxu0 %v737
      %854 = vmatpush.bf16.msra.mxu0 %v736
      %855 = vmatmul.bf16.gmra.mxu0 %v411
      %v856 = vpop.f32.mrf.mxu0
      %v857 = vadd.f32 %v538, %v856
      %v858 = vpop.f32.mrf.mxu0
      %v859 = vadd.f32 %v538, %v858
      %860 = vmatmul.bf16.gmra.mxu0 %v418
      %v861 = vpop.f32.mrf.mxu0
      %v862 = vadd.f32 %v538, %v861
      %v863 = vpop.f32.mrf.mxu0
      %v864 = vadd.f32 %v538, %v863
      %865 = vmatmul.bf16.gmra.mxu0 %v425
      %v866 = vpop.f32.mrf.mxu0
      %v867 = vadd.f32 %v538, %v866
      %v868 = vpop.f32.mrf.mxu0
      %v869 = vadd.f32 %v538, %v868
      %870 = vmatmul.bf16.gmra.mxu0 %v432
      %v871 = vpop.f32.mrf.mxu0
      %v872 = vadd.f32 %v538, %v871
      %v873 = vpop.f32.mrf.mxu0
      %v874 = vadd.f32 %v538, %v873
      %875 = vdwg.mxu0
      %876 = vmatpush.bf16.msra.mxu0 %v751
      %877 = vmatpush.bf16.msra.mxu0 %v750
      %878 = vmatpush.bf16.msra.mxu0 %v749
      %879 = vmatpush.bf16.msra.mxu0 %v748
      %880 = vmatpush.bf16.msra.mxu0 %v747
      %881 = vmatpush.bf16.msra.mxu0 %v746
      %882 = vmatpush.bf16.msra.mxu0 %v745
      %883 = vmatpush.bf16.msra.mxu0 %v744
      %884 = vmatmul.bf16.gmra.mxu0 %v412
      %v885 = vpop.f32.mrf.mxu0
      %v886 = vadd.f32 %v857, %v885
      %v887 = vpop.f32.mrf.mxu0
      %v888 = vadd.f32 %v859, %v887
      %889 = vmatmul.bf16.gmra.mxu0 %v419
      %v890 = vpop.f32.mrf.mxu0
      %v891 = vadd.f32 %v862, %v890
      %v892 = vpop.f32.mrf.mxu0
      %v893 = vadd.f32 %v864, %v892
      %894 = vmatmul.bf16.gmra.mxu0 %v426
      %v895 = vpop.f32.mrf.mxu0
      %v896 = vadd.f32 %v867, %v895
      %v897 = vpop.f32.mrf.mxu0
      %v898 = vadd.f32 %v869, %v897
      %899 = vmatmul.bf16.gmra.mxu0 %v433
      %v900 = vpop.f32.mrf.mxu0
      %v901 = vadd.f32 %v872, %v900
      %v902 = vpop.f32.mrf.mxu0
      %v903 = vadd.f32 %v874, %v902
      %904 = vdwg.mxu0
      %905 = vmatpush.bf16.msra.mxu0 %v759
      %906 = vmatpush.bf16.msra.mxu0 %v758
      %907 = vmatpush.bf16.msra.mxu0 %v757
      %908 = vmatpush.bf16.msra.mxu0 %v756
      %909 = vmatpush.bf16.msra.mxu0 %v755
      %910 = vmatpush.bf16.msra.mxu0 %v754
      %911 = vmatpush.bf16.msra.mxu0 %v753
      %912 = vmatpush.bf16.msra.mxu0 %v752
      %913 = vmatmul.bf16.gmra.mxu0 %v413
      %v914 = vpop.f32.mrf.mxu0
      %v915 = vadd.f32 %v886, %v914
      %v916 = vpop.f32.mrf.mxu0
      %v917 = vadd.f32 %v888, %v916
      %918 = vmatmul.bf16.gmra.mxu0 %v420
      %v919 = vpop.f32.mrf.mxu0
      %v920 = vadd.f32 %v891, %v919
      %v921 = vpop.f32.mrf.mxu0
      %v922 = vadd.f32 %v893, %v921
      %923 = vmatmul.bf16.gmra.mxu0 %v427
      %v924 = vpop.f32.mrf.mxu0
      %v925 = vadd.f32 %v896, %v924
      %v926 = vpop.f32.mrf.mxu0
      %v927 = vadd.f32 %v898, %v926
      %928 = vmatmul.bf16.gmra.mxu0 %v434
      %v929 = vpop.f32.mrf.mxu0
      %v930 = vadd.f32 %v901, %v929
      %v931 = vpop.f32.mrf.mxu0
      %v932 = vadd.f32 %v903, %v931
      %933 = vdwg.mxu0
      %934 = vmatpush.bf16.msra.mxu0 %v767
      %935 = vmatpush.bf16.msra.mxu0 %v766
      %936 = vmatpush.bf16.msra.mxu0 %v765
      %937 = vmatpush.bf16.msra.mxu0 %v764
      %938 = vmatpush.bf16.msra.mxu0 %v763
      %939 = vmatpush.bf16.msra.mxu0 %v762
      %940 = vmatpush.bf16.msra.mxu0 %v761
      %941 = vmatpush.bf16.msra.mxu0 %v760
      %942 = vmatmul.bf16.gmra.mxu0 %v414
      %v943 = vpop.f32.mrf.mxu0
      %v944 = vadd.f32 %v915, %v943
      %v945 = vpop.f32.mrf.mxu0
      %v946 = vadd.f32 %v917, %v945
      %947 = vmatmul.bf16.gmra.mxu0 %v421
      %v948 = vpop.f32.mrf.mxu0
      %v949 = vadd.f32 %v920, %v948
      %v950 = vpop.f32.mrf.mxu0
      %v951 = vadd.f32 %v922, %v950
      %952 = vmatmul.bf16.gmra.mxu0 %v428
      %v953 = vpop.f32.mrf.mxu0
      %v954 = vadd.f32 %v925, %v953
      %v955 = vpop.f32.mrf.mxu0
      %v956 = vadd.f32 %v927, %v955
      %957 = vmatmul.bf16.gmra.mxu0 %v435
      %v958 = vpop.f32.mrf.mxu0
      %v959 = vadd.f32 %v930, %v958
      %v960 = vpop.f32.mrf.mxu0
      %v961 = vadd.f32 %v932, %v960
      %962 = vdwg.mxu0
      %963 = vmatpush.bf16.msra.mxu0 %v775
      %964 = vmatpush.bf16.msra.mxu0 %v774
      %965 = vmatpush.bf16.msra.mxu0 %v773
      %966 = vmatpush.bf16.msra.mxu0 %v772
      %967 = vmatpush.bf16.msra.mxu0 %v771
      %968 = vmatpush.bf16.msra.mxu0 %v770
      %969 = vmatpush.bf16.msra.mxu0 %v769
      %970 = vmatpush.bf16.msra.mxu0 %v768
      %971 = vmatmul.bf16.gmra.mxu0 %v415
      %v972 = vpop.f32.mrf.mxu0
      %v973 = vadd.f32 %v944, %v972
      %v974 = vpop.f32.mrf.mxu0
      %v975 = vadd.f32 %v946, %v974
      %976 = vmatmul.bf16.gmra.mxu0 %v422
      %v977 = vpop.f32.mrf.mxu0
      %v978 = vadd.f32 %v949, %v977
      %v979 = vpop.f32.mrf.mxu0
      %v980 = vadd.f32 %v951, %v979
      %981 = vmatmul.bf16.gmra.mxu0 %v429
      %v982 = vpop.f32.mrf.mxu0
      %v983 = vadd.f32 %v954, %v982
      %v984 = vpop.f32.mrf.mxu0
      %v985 = vadd.f32 %v956, %v984
      %986 = vmatmul.bf16.gmra.mxu0 %v436
      %v987 = vpop.f32.mrf.mxu0
      %v988 = vadd.f32 %v959, %v987
      %v989 = vpop.f32.mrf.mxu0
      %v990 = vadd.f32 %v961, %v989
      %991 = vdwg.mxu0
      %992 = vmatpush.bf16.msra.mxu0 %v783
      %993 = vmatpush.bf16.msra.mxu0 %v782
      %994 = vmatpush.bf16.msra.mxu0 %v781
      %995 = vmatpush.bf16.msra.mxu0 %v780
      %996 = vmatpush.bf16.msra.mxu0 %v779
      %997 = vmatpush.bf16.msra.mxu0 %v778
      %998 = vmatpush.bf16.msra.mxu0 %v777
      %999 = vmatpush.bf16.msra.mxu0 %v776
      %1000 = vmatmul.bf16.gmra.mxu0 %v416
      %v1001 = vpop.f32.mrf.mxu0
      %v1002 = vadd.f32 %v973, %v1001
      %v1003 = vpop.f32.mrf.mxu0
      %v1004 = vadd.f32 %v975, %v1003
      %1005 = vmatmul.bf16.gmra.mxu0 %v423
      %v1006 = vpop.f32.mrf.mxu0
      %v1007 = vadd.f32 %v978, %v1006
      %v1008 = vpop.f32.mrf.mxu0
      %v1009 = vadd.f32 %v980, %v1008
      %1010 = vmatmul.bf16.gmra.mxu0 %v430
      %v1011 = vpop.f32.mrf.mxu0
      %v1012 = vadd.f32 %v983, %v1011
      %v1013 = vpop.f32.mrf.mxu0
      %v1014 = vadd.f32 %v985, %v1013
      %1015 = vmatmul.bf16.gmra.mxu0 %v437
      %v1016 = vpop.f32.mrf.mxu0
      %v1017 = vadd.f32 %v988, %v1016
      %v1018 = vpop.f32.mrf.mxu0
      %v1019 = vadd.f32 %v990, %v1018
      %1020 = vdwg.mxu0
      %1021 = vmatpush.bf16.msra.mxu0 0
      %1022 = vmatpush.bf16.msra.mxu0 0
      %1023 = vmatpush.bf16.msra.mxu0 0
      %1024 = vmatpush.bf16.msra.mxu0 0
      %1025 = vmatpush.bf16.msra.mxu0 0
      %1026 = vmatpush.bf16.msra.mxu0 0
      %1027 = vmatpush.bf16.msra.mxu0 0
      %1028 = vmatpush.bf16.msra.mxu0 %v784
      %1029 = vmatmul.bf16.gmra.mxu0 %v836
      %v1030 = vpop.f32.mrf.mxu0
      %v1031 = vadd.f32 %v1002, %v1030
      %v1032 = vpop.f32.mrf.mxu0
      %v1033 = vadd.f32 %v1004, %v1032
      %1034 = vmatmul.bf16.gmra.mxu0 %v839
      %v1035 = vpop.f32.mrf.mxu0
      %v1036 = vadd.f32 %v1007, %v1035
      %v1037 = vpop.f32.mrf.mxu0
      %v1038 = vadd.f32 %v1009, %v1037
      %1039 = vmatmul.bf16.gmra.mxu0 %v842
      %v1040 = vpop.f32.mrf.mxu0
      %v1041 = vadd.f32 %v1012, %v1040
      %v1042 = vpop.f32.mrf.mxu0
      %v1043 = vadd.f32 %v1014, %v1042
      %1044 = vmatmul.bf16.gmra.mxu0 %v845
      %v1045 = vpop.f32.mrf.mxu0
      %v1046 = vadd.f32 %v1017, %v1045
      %v1047 = vpop.f32.mrf.mxu0
      %v1048 = vadd.f32 %v1019, %v1047
      %1049 = vdwg.mxu0
      %v1050 = vmax.f32 %v1031, 0.0
      %v1051 = vmax.f32 %v1033, 0.0
      %v1052 = vmax.f32 %v1036, 0.0
      %v1053 = vmax.f32 %v1038, 0.0
      %v1054 = vmax.f32 %v1041, 0.0
      %v1055 = vmax.f32 %v1043, 0.0
      %v1056 = vmax.f32 %v1046, 0.0
      %v1057 = vmax.f32 %v1048, 0.0
      %v1058 = vld [vmem:[%s3] sm:$0xff]
      %v1059 = vld [vmem:[%s3 + $0x8] sm:$0xff]
      %v1060 = vld [vmem:[%s3 + $0x10] sm:$0xff]
      %v1061 = vld [vmem:[%s3 + $0x18] sm:$0xff]
      %v1062 = vld [vmem:[%s3 + $0x20] sm:$0xff]
      %v1063 = vld [vmem:[%s3 + $0x28] sm:$0xff]
      %v1064 = vld [vmem:[%s3 + $0x30] sm:$0xff]
      %v1065 = vld [vmem:[%s3 + $0x38] sm:$0xff]
      %v1067 = vperm.slane %v352, 0
      %vm1069 = vcmask 523264
      %v1071 = vsel %vm1069, %v1050, 0
      %v1074 = vsel %vm1069, %v1051, 0
      %v1077 = vsel %vm1069, %v1052, 0
      %v1080 = vsel %vm1069, %v1053, 0
      %v1083 = vsel %vm1069, %v1054, 0
      %v1086 = vsel %vm1069, %v1055, 0
      %v1089 = vsel %vm1069, %v1056, 0
      %v1092 = vsel %vm1069, %v1057, 0
      %1094 = vmatpush.msra.mxu0 0.0
      %1095 = vmatpush.msra.mxu0 0.0
      %1096 = vmatpush.msra.mxu0 0.0
      %1097 = vmatpush.msra.mxu0 0.0
      %1098 = vmatpush.msra.mxu0 0.0
      %1099 = vmatpush.msra.mxu0 0.0
      %1100 = vmatpush.msra.mxu0 0.0
      %1101 = vmatpush.msra.mxu0 0.0
      %1102 = vmatpush.msra.mxu0 %v1065
      %1103 = vmatpush.msra.mxu0 %v1064
      %1104 = vmatpush.msra.mxu0 %v1063
      %1105 = vmatpush.msra.mxu0 %v1062
      %1106 = vmatpush.msra.mxu0 %v1061
      %1107 = vmatpush.msra.mxu0 %v1060
      %1108 = vmatpush.msra.mxu0 %v1059
      %1109 = vmatpush.msra.mxu0 %v1058
      %1110 = vmatmul.f32.gmra.mxu0 %v1071
      %v1111 = vpop.f32.mrf.mxu0
      %v1112 = vadd.f32 %v1067, %v1111
      %1113 = vmatmul.f32.gmra.mxu0 %v1074
      %v1114 = vpop.f32.mrf.mxu0
      %v1115 = vadd.f32 %v1067, %v1114
      %1116 = vmatmul.f32.gmra.mxu0 %v1077
      %v1117 = vpop.f32.mrf.mxu0
      %v1118 = vadd.f32 %v1067, %v1117
      %1119 = vmatmul.f32.gmra.mxu0 %v1080
      %v1120 = vpop.f32.mrf.mxu0
      %v1121 = vadd.f32 %v1067, %v1120
      %1122 = vmatmul.f32.gmra.mxu0 %v1083
      %v1123 = vpop.f32.mrf.mxu0
      %v1124 = vadd.f32 %v1067, %v1123
      %1125 = vmatmul.f32.gmra.mxu0 %v1086
      %v1126 = vpop.f32.mrf.mxu0
      %v1127 = vadd.f32 %v1067, %v1126
      %1128 = vmatmul.f32.gmra.mxu0 %v1089
      %v1129 = vpop.f32.mrf.mxu0
      %v1130 = vadd.f32 %v1067, %v1129
      %1131 = vmatmul.f32.gmra.mxu0 %v1092
      %v1132 = vpop.f32.mrf.mxu0
      %v1133 = vadd.f32 %v1067, %v1132
      %1134 = vdwg.mxu0
      %v1135 = vmax.f32 %v1112, 0.0
      %v1136 = vmax.f32 %v1115, 0.0
      %v1137 = vmax.f32 %v1118, 0.0
      %v1138 = vmax.f32 %v1121, 0.0
      %v1139 = vmax.f32 %v1124, 0.0
      %v1140 = vmax.f32 %v1127, 0.0
      %v1141 = vmax.f32 %v1130, 0.0
      %v1142 = vmax.f32 %v1133, 0.0
      %vm1143 = vcmp.ne.f32.partialorder %v1112, %v1112
      %vm1144 = vcmp.ne.f32.partialorder %v1115, %v1115
      %vm1145 = vcmp.ne.f32.partialorder %v1118, %v1118
      %vm1146 = vcmp.ne.f32.partialorder %v1121, %v1121
      %vm1147 = vcmp.ne.f32.partialorder %v1124, %v1124
      %vm1148 = vcmp.ne.f32.partialorder %v1127, %v1127
      %vm1149 = vcmp.ne.f32.partialorder %v1130, %v1130
      %vm1150 = vcmp.ne.f32.partialorder %v1133, %v1133
      %v1151 = vadd.f32 %v1112, 0.0
      %v1152 = vadd.f32 %v1115, 0.0
      %v1153 = vadd.f32 %v1118, 0.0
      %v1154 = vadd.f32 %v1121, 0.0
      %v1155 = vadd.f32 %v1124, 0.0
      %v1156 = vadd.f32 %v1127, 0.0
      %v1157 = vadd.f32 %v1130, 0.0
      %v1158 = vadd.f32 %v1133, 0.0
      %v1159 = vand.u32 2147483647, %v1112
      %v1160 = vand.u32 2147483647, %v1115
      %v1161 = vand.u32 2147483647, %v1118
      %v1162 = vand.u32 2147483647, %v1121
      %v1163 = vand.u32 2147483647, %v1124
      %v1164 = vand.u32 2147483647, %v1127
      %v1165 = vand.u32 2147483647, %v1130
      %v1166 = vand.u32 2147483647, %v1133
      %v1167 = vsub.f32 0.0, %v1159
      %v1168 = vsub.f32 0.0, %v1160
      %v1169 = vsub.f32 0.0, %v1161
      %v1170 = vsub.f32 0.0, %v1162
      %v1171 = vsub.f32 0.0, %v1163
      %v1172 = vsub.f32 0.0, %v1164
      %v1173 = vsub.f32 0.0, %v1165
      %v1174 = vsub.f32 0.0, %v1166
      %v1175 = vmul.f32 %v1167, 1.442695
      %v1176 = vpow.pop %v1175
      %v1177 = vmul.f32 %v1168, 1.442695
      %v1178 = vpow.pop %v1177
      %v1179 = vmul.f32 %v1169, 1.442695
      %v1180 = vpow.pop %v1179
      %v1181 = vmul.f32 %v1170, 1.442695
      %v1182 = vpow.pop %v1181
      %v1183 = vmul.f32 %v1171, 1.442695
      %v1184 = vpow.pop %v1183
      %v1185 = vmul.f32 %v1172, 1.442695
      %v1186 = vpow.pop %v1185
      %v1187 = vmul.f32 %v1173, 1.442695
      %v1188 = vpow.pop %v1187
      %v1189 = vmul.f32 %v1174, 1.442695
      %v1190 = vpow.pop %v1189
      %v1191 = vadd.f32 %v1176, 1.0
      %v1192 = vlog2.pop %v1191
      %v1193 = vmul.f32 %v1192, 0.6931472
      %v1194 = vmul.f32 -0.5, %v1176
      %v1195 = vadd.f32 %v1194, 1.0
      %v1196 = vmul.f32 %v1195, %v1176
      %v1197 = vand.u32 2147483647, %v1176
      %vm1198 = vcmp.lt.f32.partialorder %v1197, 0.0004427343
      %v1199 = vsel %vm1198, %v1196, %v1193
      %v1200 = vadd.f32 %v1178, 1.0
      %v1201 = vlog2.pop %v1200
      %v1202 = vmul.f32 %v1201, 0.6931472
      %v1203 = vmul.f32 -0.5, %v1178
      %v1204 = vadd.f32 %v1203, 1.0
      %v1205 = vmul.f32 %v1204, %v1178
      %v1206 = vand.u32 2147483647, %v1178
      %vm1207 = vcmp.lt.f32.partialorder %v1206, 0.0004427343
      %v1208 = vsel %vm1207, %v1205, %v1202
      %v1209 = vadd.f32 %v1180, 1.0
      %v1210 = vlog2.pop %v1209
      %v1211 = vmul.f32 %v1210, 0.6931472
      %v1212 = vmul.f32 -0.5, %v1180
      %v1213 = vadd.f32 %v1212, 1.0
      %v1214 = vmul.f32 %v1213, %v1180
      %v1215 = vand.u32 2147483647, %v1180
      %vm1216 = vcmp.lt.f32.partialorder %v1215, 0.0004427343
      %v1217 = vsel %vm1216, %v1214, %v1211
      %v1218 = vadd.f32 %v1182, 1.0
      %v1219 = vlog2.pop %v1218
      %v1220 = vmul.f32 %v1219, 0.6931472
      %v1221 = vmul.f32 -0.5, %v1182
      %v1222 = vadd.f32 %v1221, 1.0
      %v1223 = vmul.f32 %v1222, %v1182
      %v1224 = vand.u32 2147483647, %v1182
      %vm1225 = vcmp.lt.f32.partialorder %v1224, 0.0004427343
      %v1226 = vsel %vm1225, %v1223, %v1220
      %v1227 = vadd.f32 %v1184, 1.0
      %v1228 = vlog2.pop %v1227
      %v1229 = vmul.f32 %v1228, 0.6931472
      %v1230 = vmul.f32 -0.5, %v1184
      %v1231 = vadd.f32 %v1230, 1.0
      %v1232 = vmul.f32 %v1231, %v1184
      %v1233 = vand.u32 2147483647, %v1184
      %vm1234 = vcmp.lt.f32.partialorder %v1233, 0.0004427343
      %v1235 = vsel %vm1234, %v1232, %v1229
      %v1236 = vadd.f32 %v1186, 1.0
      %v1237 = vlog2.pop %v1236
      %v1238 = vmul.f32 %v1237, 0.6931472
      %v1239 = vmul.f32 -0.5, %v1186
      %v1240 = vadd.f32 %v1239, 1.0
      %v1241 = vmul.f32 %v1240, %v1186
      %v1242 = vand.u32 2147483647, %v1186
      %vm1243 = vcmp.lt.f32.partialorder %v1242, 0.0004427343
      %v1244 = vsel %vm1243, %v1241, %v1238
      %v1245 = vadd.f32 %v1188, 1.0
      %v1246 = vlog2.pop %v1245
      %v1247 = vmul.f32 %v1246, 0.6931472
      %v1248 = vmul.f32 -0.5, %v1188
      %v1249 = vadd.f32 %v1248, 1.0
      %v1250 = vmul.f32 %v1249, %v1188
      %v1251 = vand.u32 2147483647, %v1188
      %vm1252 = vcmp.lt.f32.partialorder %v1251, 0.0004427343
      %v1253 = vsel %vm1252, %v1250, %v1247
      %v1254 = vadd.f32 %v1190, 1.0
      %v1255 = vlog2.pop %v1254
      %v1256 = vmul.f32 %v1255, 0.6931472
      %v1257 = vmul.f32 -0.5, %v1190
      %v1258 = vadd.f32 %v1257, 1.0
      %v1259 = vmul.f32 %v1258, %v1190
      %v1260 = vand.u32 2147483647, %v1190
      %vm1261 = vcmp.lt.f32.partialorder %v1260, 0.0004427343
      %v1262 = vsel %vm1261, %v1259, %v1256
      %v1263 = vadd.f32 %v1135, %v1199
      %v1264 = vadd.f32 %v1136, %v1208
      %v1265 = vadd.f32 %v1137, %v1217
      %v1266 = vadd.f32 %v1138, %v1226
      %v1267 = vadd.f32 %v1139, %v1235
      %v1268 = vadd.f32 %v1140, %v1244
      %v1269 = vadd.f32 %v1141, %v1253
      %v1270 = vadd.f32 %v1142, %v1262
      %v1271 = vsel %vm1143, %v1151, %v1263
      %v1272 = vsel %vm1144, %v1152, %v1264
      %v1273 = vsel %vm1145, %v1153, %v1265
      %v1274 = vsel %vm1146, %v1154, %v1266
      %v1275 = vsel %vm1147, %v1155, %v1267
      %v1276 = vsel %vm1148, %v1156, %v1268
      %v1277 = vsel %vm1149, %v1157, %v1269
      %v1278 = vsel %vm1150, %v1158, %v1270
      %v1279 = vadd.f32 %v1271, 1e-06
      %v1280 = vadd.f32 %v1272, 1e-06
      %v1281 = vadd.f32 %v1273, 1e-06
      %v1282 = vadd.f32 %v1274, 1e-06
      %v1283 = vadd.f32 %v1275, 1e-06
      %v1284 = vadd.f32 %v1276, 1e-06
      %v1285 = vadd.f32 %v1277, 1e-06
      %v1286 = vadd.f32 %v1278, 1e-06
      %v1287 = vld [vmem:[%s335] sm:$0xff]
      %v1288 = vld [vmem:[%s335 + $0x8] sm:$0xff]
      %v1289 = vld [vmem:[%s335 + $0x10] sm:$0xff]
      %v1290 = vld [vmem:[%s335 + $0x18] sm:$0xff]
      %v1291 = vld [vmem:[%s335 + $0x20] sm:$0xff]
      %v1292 = vld [vmem:[%s335 + $0x28] sm:$0xff]
      %v1293 = vld [vmem:[%s335 + $0x30] sm:$0xff]
      %v1294 = vld [vmem:[%s335 + $0x38] sm:$0xff]
      %1303 = vrot.lane.b32.xlu0 %v1287, 8
      %v1304 = vpop.permute.xlu0 %1303
      %1305 = vrot.lane.b32.xlu0 %v1288, 8
      %v1306 = vpop.permute.xlu0 %1305
      %1307 = vrot.lane.b32.xlu0 %v1289, 8
      %v1308 = vpop.permute.xlu0 %1307
      %1309 = vrot.lane.b32.xlu0 %v1290, 8
      %v1310 = vpop.permute.xlu0 %1309
      %1311 = vrot.lane.b32.xlu0 %v1291, 8
      %v1312 = vpop.permute.xlu0 %1311
      %1313 = vrot.lane.b32.xlu0 %v1292, 8
      %v1314 = vpop.permute.xlu0 %1313
      %1315 = vrot.lane.b32.xlu0 %v1293, 8
      %v1316 = vpop.permute.xlu0 %1315
      %1317 = vrot.lane.b32.xlu0 %v1294, 8
      %v1318 = vpop.permute.xlu0 %1317
      %v1327 = vmul.f32 %v1279, %v1304
      %v1328 = vmul.f32 %v1280, %v1306
      %v1329 = vmul.f32 %v1281, %v1308
      %v1330 = vmul.f32 %v1282, %v1310
      %v1331 = vmul.f32 %v1283, %v1312
      %v1332 = vmul.f32 %v1284, %v1314
      %v1333 = vmul.f32 %v1285, %v1316
      %v1334 = vmul.f32 %v1286, %v1318
      %1343 = vrot.lane.b32.xlu0 %v1327, 120
      %v1344 = vpop.permute.xlu0 %1343
      %1345 = vrot.lane.b32.xlu0 %v1328, 120
      %v1346 = vpop.permute.xlu0 %1345
      %1347 = vrot.lane.b32.xlu0 %v1329, 120
      %v1348 = vpop.permute.xlu0 %1347
      %1349 = vrot.lane.b32.xlu0 %v1330, 120
      %v1350 = vpop.permute.xlu0 %1349
      %1351 = vrot.lane.b32.xlu0 %v1331, 120
      %v1352 = vpop.permute.xlu0 %1351
      %1353 = vrot.lane.b32.xlu0 %v1332, 120
      %v1354 = vpop.permute.xlu0 %1353
      %1355 = vrot.lane.b32.xlu0 %v1333, 120
      %v1356 = vpop.permute.xlu0 %1355
      %1357 = vrot.lane.b32.xlu0 %v1334, 120
      %v1358 = vpop.permute.xlu0 %1357
      %v1367 = vadd.f32 %v1112, %v1344
      %v1368 = vadd.f32 %v1115, %v1346
      %v1369 = vadd.f32 %v1118, %v1348
      %v1370 = vadd.f32 %v1121, %v1350
      %v1371 = vadd.f32 %v1124, %v1352
      %v1372 = vadd.f32 %v1127, %v1354
      %v1373 = vadd.f32 %v1130, %v1356
      %v1374 = vadd.f32 %v1133, %v1358
      %v1375 = vld [vmem:[%s4] sm:$0xff]
      %v1377 = vperm.slane %v353, 0
      %vm1379 = vcmask 64512
      %v1381 = vsel %vm1379, %v1367, 0
      %v1384 = vsel %vm1379, %v1368, 0
      %v1387 = vsel %vm1379, %v1369, 0
      %v1390 = vsel %vm1379, %v1370, 0
      %v1393 = vsel %vm1379, %v1371, 0
      %v1396 = vsel %vm1379, %v1372, 0
      %v1399 = vsel %vm1379, %v1373, 0
      %v1402 = vsel %vm1379, %v1374, 0
      %1404 = vmatpush.msra.mxu0 0.0
      %1405 = vmatpush.msra.mxu0 0.0
      %1406 = vmatpush.msra.mxu0 0.0
      %1407 = vmatpush.msra.mxu0 0.0
      %1408 = vmatpush.msra.mxu0 0.0
      %1409 = vmatpush.msra.mxu0 0.0
      %1410 = vmatpush.msra.mxu0 0.0
      %1411 = vmatpush.msra.mxu0 0.0
      %1412 = vmatpush.msra.mxu0 0.0
      %1413 = vmatpush.msra.mxu0 0.0
      %1414 = vmatpush.msra.mxu0 0.0
      %1415 = vmatpush.msra.mxu0 0.0
      %1416 = vmatpush.msra.mxu0 0.0
      %1417 = vmatpush.msra.mxu0 0.0
      %1418 = vmatpush.msra.mxu0 0.0
      %1419 = vmatpush.msra.mxu0 %v1375
      %1420 = vmatmul.f32.gmra.mxu0 %v1381
      %v1421 = vpop.f32.mrf.mxu0
      %v1422 = vadd.f32 %v1377, %v1421
      %1423 = vmatmul.f32.gmra.mxu0 %v1384
      %v1424 = vpop.f32.mrf.mxu0
      %v1425 = vadd.f32 %v1377, %v1424
      %1426 = vmatmul.f32.gmra.mxu0 %v1387
      %v1427 = vpop.f32.mrf.mxu0
      %v1428 = vadd.f32 %v1377, %v1427
      %1429 = vmatmul.f32.gmra.mxu0 %v1390
      %v1430 = vpop.f32.mrf.mxu0
      %v1431 = vadd.f32 %v1377, %v1430
      %1432 = vmatmul.f32.gmra.mxu0 %v1393
      %v1433 = vpop.f32.mrf.mxu0
      %v1434 = vadd.f32 %v1377, %v1433
      %1435 = vmatmul.f32.gmra.mxu0 %v1396
      %v1436 = vpop.f32.mrf.mxu0
      %v1437 = vadd.f32 %v1377, %v1436
      %1438 = vmatmul.f32.gmra.mxu0 %v1399
      %v1439 = vpop.f32.mrf.mxu0
      %v1440 = vadd.f32 %v1377, %v1439
      %1441 = vmatmul.f32.gmra.mxu0 %v1402
      %v1442 = vpop.f32.mrf.mxu0
      %v1443 = vadd.f32 %v1377, %v1442
      %1444 = vdwg.mxu0
      %v1445 = vmax.f32 %v1422, 0.0
      %v1446 = vmax.f32 %v1425, 0.0
      %v1447 = vmax.f32 %v1428, 0.0
      %v1448 = vmax.f32 %v1431, 0.0
      %v1449 = vmax.f32 %v1434, 0.0
      %v1450 = vmax.f32 %v1437, 0.0
      %v1451 = vmax.f32 %v1440, 0.0
      %v1452 = vmax.f32 %v1443, 0.0
      %v1453 = vpack.c.bf16 %v1446, %v1445
      %v1454 = vpack.c.bf16 %v1448, %v1447
      %v1455 = vpack.c.bf16 %v1450, %v1449
      %v1456 = vpack.c.bf16 %v1452, %v1451
      %v1457 = vld [vmem:[%s5] sm:$0xff]
      %v1458 = vld [vmem:[%s5 + $0x8] sm:$0xff]
      %v1459 = vld [vmem:[%s5 + $0x10] sm:$0xff]
      %v1460 = vld [vmem:[%s5 + $0x18] sm:$0xf]
      %v1461 = vld [vmem:[%s5 + $0x1c] sm:$0xff]
      %v1462 = vld [vmem:[%s5 + $0x24] sm:$0xff]
      %v1463 = vld [vmem:[%s5 + $0x2c] sm:$0xff]
      %v1464 = vld [vmem:[%s5 + $0x34] sm:$0xf]
      %v1465 = vld [vmem:[%s5 + $0x38] sm:$0xff]
      %v1466 = vld [vmem:[%s5 + $0x40] sm:$0xff]
      %v1467 = vld [vmem:[%s5 + $0x48] sm:$0xff]
      %v1468 = vld [vmem:[%s5 + $0x50] sm:$0xf]
      %v1469 = vld [vmem:[%s5 + $0x54] sm:$0xff]
      %v1470 = vld [vmem:[%s5 + $0x5c] sm:$0xff]
      %v1471 = vld [vmem:[%s5 + $0x64] sm:$0xff]
      %v1472 = vld [vmem:[%s5 + $0x6c] sm:$0xf]
      %v1473 = vld [vmem:[%s5 + $0x70] sm:$0xff]
      %v1474 = vld [vmem:[%s5 + $0x78] sm:$0xff]
      %v1475 = vld [vmem:[%s5 + $0x80] sm:$0xff]
      %v1476 = vld [vmem:[%s5 + $0x88] sm:$0xf]
      %v1477 = vld [vmem:[%s5 + $0x8c] sm:$0xff]
      %v1478 = vld [vmem:[%s5 + $0x94] sm:$0xff]
      %v1479 = vld [vmem:[%s5 + $0x9c] sm:$0xff]
      %v1480 = vld [vmem:[%s5 + $0xa4] sm:$0xf]
      %v1481 = vld [vmem:[%s5 + $0xa8] sm:$0xff]
      %v1482 = vld [vmem:[%s5 + $0xb0] sm:$0xff]
      %v1483 = vld [vmem:[%s5 + $0xb8] sm:$0xff]
      %v1484 = vld [vmem:[%s5 + $0xc0] sm:$0xf]
      %v1485 = vld [vmem:[%s5 + $0xc4] sm:$0xff]
      %v1486 = vld [vmem:[%s5 + $0xcc] sm:$0xff]
      %v1487 = vld [vmem:[%s5 + $0xd4] sm:$0xff]
      %v1488 = vld [vmem:[%s5 + $0xdc] sm:$0xf]
      %v1490 = vperm.slane %v354, 0
      %v1491 = vperm.slane %v354, 1
      %v1492 = vperm.slane %v354, 2
      %v1493 = vperm.slane %v354, 3
      %v1494 = vperm.slane %v354, 4
      %v1495 = vperm.slane %v354, 5
      %v1496 = vperm.slane %v354, 6
      %v1536 = vunpack.c.l.b16 %v1457
      %v1537 = vunpack.c.h.b16 %v1457
      %v1538 = vunpack.c.l.b16 %v1458
      %v1539 = vunpack.c.h.b16 %v1458
      %v1540 = vunpack.c.l.b16 %v1459
      %v1541 = vunpack.c.h.b16 %v1459
      %v1542 = vunpack.c.l.b16 %v1460
      %v1543 = vunpack.c.l.b16 %v1461
      %v1544 = vunpack.c.h.b16 %v1461
      %v1545 = vunpack.c.l.b16 %v1462
      %v1546 = vunpack.c.h.b16 %v1462
      %v1547 = vunpack.c.l.b16 %v1463
      %v1548 = vunpack.c.h.b16 %v1463
      %v1549 = vunpack.c.l.b16 %v1464
      %v1550 = vunpack.c.l.b16 %v1465
      %v1551 = vunpack.c.h.b16 %v1465
      %v1552 = vunpack.c.l.b16 %v1466
      %v1553 = vunpack.c.h.b16 %v1466
      %v1554 = vunpack.c.l.b16 %v1467
      %v1555 = vunpack.c.h.b16 %v1467
      %v1556 = vunpack.c.l.b16 %v1468
      %v1557 = vunpack.c.l.b16 %v1469
      %v1558 = vunpack.c.h.b16 %v1469
      %v1559 = vunpack.c.l.b16 %v1470
      %v1560 = vunpack.c.h.b16 %v1470
      %v1561 = vunpack.c.l.b16 %v1471
      %v1562 = vunpack.c.h.b16 %v1471
      %v1563 = vunpack.c.l.b16 %v1472
      %v1564 = vunpack.c.l.b16 %v1473
      %v1565 = vunpack.c.h.b16 %v1473
      %v1566 = vunpack.c.l.b16 %v1474
      %v1567 = vunpack.c.h.b16 %v1474
      %v1568 = vunpack.c.l.b16 %v1475
      %v1569 = vunpack.c.h.b16 %v1475
      %v1570 = vunpack.c.l.b16 %v1476
      %v1571 = vunpack.c.l.b16 %v1477
      %v1572 = vunpack.c.h.b16 %v1477
      %v1573 = vunpack.c.l.b16 %v1478
      %v1574 = vunpack.c.h.b16 %v1478
      %v1575 = vunpack.c.l.b16 %v1479
      %v1576 = vunpack.c.h.b16 %v1479
      %v1577 = vunpack.c.l.b16 %v1480
      %v1578 = vunpack.c.l.b16 %v1481
      %v1579 = vunpack.c.h.b16 %v1481
      %v1580 = vunpack.c.l.b16 %v1482
      %v1581 = vunpack.c.h.b16 %v1482
      %v1582 = vunpack.c.l.b16 %v1483
      %v1583 = vunpack.c.h.b16 %v1483
      %v1584 = vunpack.c.l.b16 %v1484
      %v1585 = vunpack.c.l.b16 %v1485
      %v1586 = vunpack.c.h.b16 %v1485
      %v1587 = vunpack.c.l.b16 %v1486
      %v1588 = vunpack.c.h.b16 %v1486
      %v1589 = vunpack.c.l.b16 %v1487
      %v1590 = vunpack.c.h.b16 %v1487
      %v1591 = vunpack.c.l.b16 %v1488
      %v1592 = vpack.c.b16 %v1543, %v1536
      %v1593 = vpack.c.b16 %v1544, %v1537
      %v1594 = vpack.c.b16 %v1545, %v1538
      %v1595 = vpack.c.b16 %v1546, %v1539
      %v1596 = vpack.c.b16 %v1547, %v1540
      %v1597 = vpack.c.b16 %v1548, %v1541
      %v1598 = vpack.c.b16 %v1549, %v1542
      %v1599 = vpack.c.b16 %v1557, %v1550
      %v1600 = vpack.c.b16 %v1558, %v1551
      %v1601 = vpack.c.b16 %v1559, %v1552
      %v1602 = vpack.c.b16 %v1560, %v1553
      %v1603 = vpack.c.b16 %v1561, %v1554
      %v1604 = vpack.c.b16 %v1562, %v1555
      %v1605 = vpack.c.b16 %v1563, %v1556
      %v1606 = vpack.c.b16 %v1571, %v1564
      %v1607 = vpack.c.b16 %v1572, %v1565
      %v1608 = vpack.c.b16 %v1573, %v1566
      %v1609 = vpack.c.b16 %v1574, %v1567
      %v1610 = vpack.c.b16 %v1575, %v1568
      %v1611 = vpack.c.b16 %v1576, %v1569
      %v1612 = vpack.c.b16 %v1577, %v1570
      %v1613 = vpack.c.b16 %v1585, %v1578
      %v1614 = vpack.c.b16 %v1586, %v1579
      %v1615 = vpack.c.b16 %v1587, %v1580
      %v1616 = vpack.c.b16 %v1588, %v1581
      %v1617 = vpack.c.b16 %v1589, %v1582
      %v1618 = vpack.c.b16 %v1590, %v1583
      %v1619 = vpack.c.b16 %v1591, %v1584
      %v1649 = vsel %vm1069, %v1453, 0
      %v1652 = vsel %vm1069, %v1454, 0
      %v1655 = vsel %vm1069, %v1455, 0
      %v1658 = vsel %vm1069, %v1456, 0
      %1660 = vmatpush.bf16.msra.mxu0 0
      %1661 = vmatpush.bf16.msra.mxu0 0
      %1662 = vmatpush.bf16.msra.mxu0 0
      %1663 = vmatpush.bf16.msra.mxu0 0
      %1664 = vmatpush.bf16.msra.mxu0 %v1613
      %1665 = vmatpush.bf16.msra.mxu0 %v1606
      %1666 = vmatpush.bf16.msra.mxu0 %v1599
      %1667 = vmatpush.bf16.msra.mxu0 %v1592
      %1668 = vmatmul.bf16.gmra.mxu0 %v1649
      %v1669 = vpop.f32.mrf.mxu0
      %v1670 = vadd.f32 %v1490, %v1669
      %v1671 = vpop.f32.mrf.mxu0
      %v1672 = vadd.f32 %v1490, %v1671
      %1673 = vmatmul.bf16.gmra.mxu0 %v1652
      %v1674 = vpop.f32.mrf.mxu0
      %v1675 = vadd.f32 %v1490, %v1674
      %v1676 = vpop.f32.mrf.mxu0
      %v1677 = vadd.f32 %v1490, %v1676
      %1678 = vmatmul.bf16.gmra.mxu0 %v1655
      %v1679 = vpop.f32.mrf.mxu0
      %v1680 = vadd.f32 %v1490, %v1679
      %v1681 = vpop.f32.mrf.mxu0
      %v1682 = vadd.f32 %v1490, %v1681
      %1683 = vmatmul.bf16.gmra.mxu0 %v1658
      %v1684 = vpop.f32.mrf.mxu0
      %v1685 = vadd.f32 %v1490, %v1684
      %v1686 = vpop.f32.mrf.mxu0
      %v1687 = vadd.f32 %v1490, %v1686
      %1688 = vdwg.mxu0
      %1689 = vmatpush.bf16.msra.mxu0 0
      %1690 = vmatpush.bf16.msra.mxu0 0
      %1691 = vmatpush.bf16.msra.mxu0 0
      %1692 = vmatpush.bf16.msra.mxu0 0
      %1693 = vmatpush.bf16.msra.mxu0 %v1614
      %1694 = vmatpush.bf16.msra.mxu0 %v1607
      %1695 = vmatpush.bf16.msra.mxu0 %v1600
      %1696 = vmatpush.bf16.msra.mxu0 %v1593
      %1697 = vmatmul.bf16.gmra.mxu0 %v1649
      %v1698 = vpop.f32.mrf.mxu0
      %v1699 = vadd.f32 %v1491, %v1698
      %v1700 = vpop.f32.mrf.mxu0
      %v1701 = vadd.f32 %v1491, %v1700
      %1702 = vmatmul.bf16.gmra.mxu0 %v1652
      %v1703 = vpop.f32.mrf.mxu0
      %v1704 = vadd.f32 %v1491, %v1703
      %v1705 = vpop.f32.mrf.mxu0
      %v1706 = vadd.f32 %v1491, %v1705
      %1707 = vmatmul.bf16.gmra.mxu0 %v1655
      %v1708 = vpop.f32.mrf.mxu0
      %v1709 = vadd.f32 %v1491, %v1708
      %v1710 = vpop.f32.mrf.mxu0
      %v1711 = vadd.f32 %v1491, %v1710
      %1712 = vmatmul.bf16.gmra.mxu0 %v1658
      %v1713 = vpop.f32.mrf.mxu0
      %v1714 = vadd.f32 %v1491, %v1713
      %v1715 = vpop.f32.mrf.mxu0
      %v1716 = vadd.f32 %v1491, %v1715
      %1717 = vdwg.mxu0
      %1718 = vmatpush.bf16.msra.mxu0 0
      %1719 = vmatpush.bf16.msra.mxu0 0
      %1720 = vmatpush.bf16.msra.mxu0 0
      %1721 = vmatpush.bf16.msra.mxu0 0
      %1722 = vmatpush.bf16.msra.mxu0 %v1615
      %1723 = vmatpush.bf16.msra.mxu0 %v1608
      %1724 = vmatpush.bf16.msra.mxu0 %v1601
      %1725 = vmatpush.bf16.msra.mxu0 %v1594
      %1726 = vmatmul.bf16.gmra.mxu0 %v1649
      %v1727 = vpop.f32.mrf.mxu0
      %v1728 = vadd.f32 %v1492, %v1727
      %v1729 = vpop.f32.mrf.mxu0
      %v1730 = vadd.f32 %v1492, %v1729
      %1731 = vmatmul.bf16.gmra.mxu0 %v1652
      %v1732 = vpop.f32.mrf.mxu0
      %v1733 = vadd.f32 %v1492, %v1732
      %v1734 = vpop.f32.mrf.mxu0
      %v1735 = vadd.f32 %v1492, %v1734
      %1736 = vmatmul.bf16.gmra.mxu0 %v1655
      %v1737 = vpop.f32.mrf.mxu0
      %v1738 = vadd.f32 %v1492, %v1737
      %v1739 = vpop.f32.mrf.mxu0
      %v1740 = vadd.f32 %v1492, %v1739
      %1741 = vmatmul.bf16.gmra.mxu0 %v1658
      %v1742 = vpop.f32.mrf.mxu0
      %v1743 = vadd.f32 %v1492, %v1742
      %v1744 = vpop.f32.mrf.mxu0
      %v1745 = vadd.f32 %v1492, %v1744
      %1746 = vdwg.mxu0
      %1747 = vmatpush.bf16.msra.mxu0 0
      %1748 = vmatpush.bf16.msra.mxu0 0
      %1749 = vmatpush.bf16.msra.mxu0 0
      %1750 = vmatpush.bf16.msra.mxu0 0
      %1751 = vmatpush.bf16.msra.mxu0 %v1616
      %1752 = vmatpush.bf16.msra.mxu0 %v1609
      %1753 = vmatpush.bf16.msra.mxu0 %v1602
      %1754 = vmatpush.bf16.msra.mxu0 %v1595
      %1755 = vmatmul.bf16.gmra.mxu0 %v1649
      %v1756 = vpop.f32.mrf.mxu0
      %v1757 = vadd.f32 %v1493, %v1756
      %v1758 = vpop.f32.mrf.mxu0
      %v1759 = vadd.f32 %v1493, %v1758
      %1760 = vmatmul.bf16.gmra.mxu0 %v1652
      %v1761 = vpop.f32.mrf.mxu0
      %v1762 = vadd.f32 %v1493, %v1761
      %v1763 = vpop.f32.mrf.mxu0
      %v1764 = vadd.f32 %v1493, %v1763
      %1765 = vmatmul.bf16.gmra.mxu0 %v1655
      %v1766 = vpop.f32.mrf.mxu0
      %v1767 = vadd.f32 %v1493, %v1766
      %v1768 = vpop.f32.mrf.mxu0
      %v1769 = vadd.f32 %v1493, %v1768
      %1770 = vmatmul.bf16.gmra.mxu0 %v1658
      %v1771 = vpop.f32.mrf.mxu0
      %v1772 = vadd.f32 %v1493, %v1771
      %v1773 = vpop.f32.mrf.mxu0
      %v1774 = vadd.f32 %v1493, %v1773
      %1775 = vdwg.mxu0
      %1776 = vmatpush.bf16.msra.mxu0 0
      %1777 = vmatpush.bf16.msra.mxu0 0
      %1778 = vmatpush.bf16.msra.mxu0 0
      %1779 = vmatpush.bf16.msra.mxu0 0
      %1780 = vmatpush.bf16.msra.mxu0 %v1617
      %1781 = vmatpush.bf16.msra.mxu0 %v1610
      %1782 = vmatpush.bf16.msra.mxu0 %v1603
      %1783 = vmatpush.bf16.msra.mxu0 %v1596
      %1784 = vmatmul.bf16.gmra.mxu0 %v1649
      %v1785 = vpop.f32.mrf.mxu0
      %v1786 = vadd.f32 %v1494, %v1785
      %v1787 = vpop.f32.mrf.mxu0
      %v1788 = vadd.f32 %v1494, %v1787
      %1789 = vmatmul.bf16.gmra.mxu0 %v1652
      %v1790 = vpop.f32.mrf.mxu0
      %v1791 = vadd.f32 %v1494, %v1790
      %v1792 = vpop.f32.mrf.mxu0
      %v1793 = vadd.f32 %v1494, %v1792
      %1794 = vmatmul.bf16.gmra.mxu0 %v1655
      %v1795 = vpop.f32.mrf.mxu0
      %v1796 = vadd.f32 %v1494, %v1795
      %v1797 = vpop.f32.mrf.mxu0
      %v1798 = vadd.f32 %v1494, %v1797
      %1799 = vmatmul.bf16.gmra.mxu0 %v1658
      %v1800 = vpop.f32.mrf.mxu0
      %v1801 = vadd.f32 %v1494, %v1800
      %v1802 = vpop.f32.mrf.mxu0
      %v1803 = vadd.f32 %v1494, %v1802
      %1804 = vdwg.mxu0
      %1805 = vmatpush.bf16.msra.mxu0 0
      %1806 = vmatpush.bf16.msra.mxu0 0
      %1807 = vmatpush.bf16.msra.mxu0 0
      %1808 = vmatpush.bf16.msra.mxu0 0
      %1809 = vmatpush.bf16.msra.mxu0 %v1618
      %1810 = vmatpush.bf16.msra.mxu0 %v1611
      %1811 = vmatpush.bf16.msra.mxu0 %v1604
      %1812 = vmatpush.bf16.msra.mxu0 %v1597
      %1813 = vmatmul.bf16.gmra.mxu0 %v1649
      %v1814 = vpop.f32.mrf.mxu0
      %v1815 = vadd.f32 %v1495, %v1814
      %v1816 = vpop.f32.mrf.mxu0
      %v1817 = vadd.f32 %v1495, %v1816
      %1818 = vmatmul.bf16.gmra.mxu0 %v1652
      %v1819 = vpop.f32.mrf.mxu0
      %v1820 = vadd.f32 %v1495, %v1819
      %v1821 = vpop.f32.mrf.mxu0
      %v1822 = vadd.f32 %v1495, %v1821
      %1823 = vmatmul.bf16.gmra.mxu0 %v1655
      %v1824 = vpop.f32.mrf.mxu0
      %v1825 = vadd.f32 %v1495, %v1824
      %v1826 = vpop.f32.mrf.mxu0
      %v1827 = vadd.f32 %v1495, %v1826
      %1828 = vmatmul.bf16.gmra.mxu0 %v1658
      %v1829 = vpop.f32.mrf.mxu0
      %v1830 = vadd.f32 %v1495, %v1829
      %v1831 = vpop.f32.mrf.mxu0
      %v1832 = vadd.f32 %v1495, %v1831
      %1833 = vdwg.mxu0
      %1834 = vmatpush.bf16.msra.mxu0 0
      %1835 = vmatpush.bf16.msra.mxu0 0
      %1836 = vmatpush.bf16.msra.mxu0 0
      %1837 = vmatpush.bf16.msra.mxu0 0
      %1838 = vmatpush.bf16.msra.mxu0 %v1619
      %1839 = vmatpush.bf16.msra.mxu0 %v1612
      %1840 = vmatpush.bf16.msra.mxu0 %v1605
      %1841 = vmatpush.bf16.msra.mxu0 %v1598
      %1842 = vmatmul.bf16.gmra.mxu0 %v1649
      %v1843 = vpop.f32.mrf.mxu0
      %v1844 = vadd.f32 %v1496, %v1843
      %v1845 = vpop.f32.mrf.mxu0
      %v1846 = vadd.f32 %v1496, %v1845
      %1847 = vmatmul.bf16.gmra.mxu0 %v1652
      %v1848 = vpop.f32.mrf.mxu0
      %v1849 = vadd.f32 %v1496, %v1848
      %v1850 = vpop.f32.mrf.mxu0
      %v1851 = vadd.f32 %v1496, %v1850
      %1852 = vmatmul.bf16.gmra.mxu0 %v1655
      %v1853 = vpop.f32.mrf.mxu0
      %v1854 = vadd.f32 %v1496, %v1853
      %v1855 = vpop.f32.mrf.mxu0
      %v1856 = vadd.f32 %v1496, %v1855
      %1857 = vmatmul.bf16.gmra.mxu0 %v1658
      %v1858 = vpop.f32.mrf.mxu0
      %v1859 = vadd.f32 %v1496, %v1858
      %v1860 = vpop.f32.mrf.mxu0
      %v1861 = vadd.f32 %v1496, %v1860
      %1862 = vdwg.mxu0
      %v1863 = vsub.f32 0.0, %v1670
      %v1864 = vsub.f32 0.0, %v1699
      %v1865 = vsub.f32 0.0, %v1728
      %v1866 = vsub.f32 0.0, %v1757
      %v1867 = vsub.f32 0.0, %v1786
      %v1868 = vsub.f32 0.0, %v1815
      %v1869 = vsub.f32 0.0, %v1844
      %v1870 = vsub.f32 0.0, %v1672
      %v1871 = vsub.f32 0.0, %v1701
      %v1872 = vsub.f32 0.0, %v1730
      %v1873 = vsub.f32 0.0, %v1759
      %v1874 = vsub.f32 0.0, %v1788
      %v1875 = vsub.f32 0.0, %v1817
      %v1876 = vsub.f32 0.0, %v1846
      %v1877 = vsub.f32 0.0, %v1675
      %v1878 = vsub.f32 0.0, %v1704
      %v1879 = vsub.f32 0.0, %v1733
      %v1880 = vsub.f32 0.0, %v1762
      %v1881 = vsub.f32 0.0, %v1791
      %v1882 = vsub.f32 0.0, %v1820
      %v1883 = vsub.f32 0.0, %v1849
      %v1884 = vsub.f32 0.0, %v1677
      %v1885 = vsub.f32 0.0, %v1706
      %v1886 = vsub.f32 0.0, %v1735
      %v1887 = vsub.f32 0.0, %v1764
      %v1888 = vsub.f32 0.0, %v1793
      %v1889 = vsub.f32 0.0, %v1822
      %v1890 = vsub.f32 0.0, %v1851
      %v1891 = vsub.f32 0.0, %v1680
      %v1892 = vsub.f32 0.0, %v1709
      %v1893 = vsub.f32 0.0, %v1738
      %v1894 = vsub.f32 0.0, %v1767
      %v1895 = vsub.f32 0.0, %v1796
      %v1896 = vsub.f32 0.0, %v1825
      %v1897 = vsub.f32 0.0, %v1854
      %v1898 = vsub.f32 0.0, %v1682
      %v1899 = vsub.f32 0.0, %v1711
      %v1900 = vsub.f32 0.0, %v1740
      %v1901 = vsub.f32 0.0, %v1769
      %v1902 = vsub.f32 0.0, %v1798
      %v1903 = vsub.f32 0.0, %v1827
      %v1904 = vsub.f32 0.0, %v1856
      %v1905 = vsub.f32 0.0, %v1685
      %v1906 = vsub.f32 0.0, %v1714
      %v1907 = vsub.f32 0.0, %v1743
      %v1908 = vsub.f32 0.0, %v1772
      %v1909 = vsub.f32 0.0, %v1801
      %v1910 = vsub.f32 0.0, %v1830
      %v1911 = vsub.f32 0.0, %v1859
      %v1912 = vsub.f32 0.0, %v1687
      %v1913 = vsub.f32 0.0, %v1716
      %v1914 = vsub.f32 0.0, %v1745
      %v1915 = vsub.f32 0.0, %v1774
      %v1916 = vsub.f32 0.0, %v1803
      %v1917 = vsub.f32 0.0, %v1832
      %v1918 = vsub.f32 0.0, %v1861
      %v1919 = vmul.f32 %v1863, 1.442695
      %v1920 = vpow.pop %v1919
      %v1921 = vmul.f32 %v1864, 1.442695
      %v1922 = vpow.pop %v1921
      %v1923 = vmul.f32 %v1865, 1.442695
      %v1924 = vpow.pop %v1923
      %v1925 = vmul.f32 %v1866, 1.442695
      %v1926 = vpow.pop %v1925
      %v1927 = vmul.f32 %v1867, 1.442695
      %v1928 = vpow.pop %v1927
      %v1929 = vmul.f32 %v1868, 1.442695
      %v1930 = vpow.pop %v1929
      %v1931 = vmul.f32 %v1869, 1.442695
      %v1932 = vpow.pop %v1931
      %v1933 = vmul.f32 %v1870, 1.442695
      %v1934 = vpow.pop %v1933
      %v1935 = vmul.f32 %v1871, 1.442695
      %v1936 = vpow.pop %v1935
      %v1937 = vmul.f32 %v1872, 1.442695
      %v1938 = vpow.pop %v1937
      %v1939 = vmul.f32 %v1873, 1.442695
      %v1940 = vpow.pop %v1939
      %v1941 = vmul.f32 %v1874, 1.442695
      %v1942 = vpow.pop %v1941
      %v1943 = vmul.f32 %v1875, 1.442695
      %v1944 = vpow.pop %v1943
      %v1945 = vmul.f32 %v1876, 1.442695
      %v1946 = vpow.pop %v1945
      %v1947 = vmul.f32 %v1877, 1.442695
      %v1948 = vpow.pop %v1947
      %v1949 = vmul.f32 %v1878, 1.442695
      %v1950 = vpow.pop %v1949
      %v1951 = vmul.f32 %v1879, 1.442695
      %v1952 = vpow.pop %v1951
      %v1953 = vmul.f32 %v1880, 1.442695
      %v1954 = vpow.pop %v1953
      %v1955 = vmul.f32 %v1881, 1.442695
      %v1956 = vpow.pop %v1955
      %v1957 = vmul.f32 %v1882, 1.442695
      %v1958 = vpow.pop %v1957
      %v1959 = vmul.f32 %v1883, 1.442695
      %v1960 = vpow.pop %v1959
      %v1961 = vmul.f32 %v1884, 1.442695
      %v1962 = vpow.pop %v1961
      %v1963 = vmul.f32 %v1885, 1.442695
      %v1964 = vpow.pop %v1963
      %v1965 = vmul.f32 %v1886, 1.442695
      %v1966 = vpow.pop %v1965
      %v1967 = vmul.f32 %v1887, 1.442695
      %v1968 = vpow.pop %v1967
      %v1969 = vmul.f32 %v1888, 1.442695
      %v1970 = vpow.pop %v1969
      %v1971 = vmul.f32 %v1889, 1.442695
      %v1972 = vpow.pop %v1971
      %v1973 = vmul.f32 %v1890, 1.442695
      %v1974 = vpow.pop %v1973
      %v1975 = vmul.f32 %v1891, 1.442695
      %v1976 = vpow.pop %v1975
      %v1977 = vmul.f32 %v1892, 1.442695
      %v1978 = vpow.pop %v1977
      %v1979 = vmul.f32 %v1893, 1.442695
      %v1980 = vpow.pop %v1979
      %v1981 = vmul.f32 %v1894, 1.442695
      %v1982 = vpow.pop %v1981
      %v1983 = vmul.f32 %v1895, 1.442695
      %v1984 = vpow.pop %v1983
      %v1985 = vmul.f32 %v1896, 1.442695
      %v1986 = vpow.pop %v1985
      %v1987 = vmul.f32 %v1897, 1.442695
      %v1988 = vpow.pop %v1987
      %v1989 = vmul.f32 %v1898, 1.442695
      %v1990 = vpow.pop %v1989
      %v1991 = vmul.f32 %v1899, 1.442695
      %v1992 = vpow.pop %v1991
      %v1993 = vmul.f32 %v1900, 1.442695
      %v1994 = vpow.pop %v1993
      %v1995 = vmul.f32 %v1901, 1.442695
      %v1996 = vpow.pop %v1995
      %v1997 = vmul.f32 %v1902, 1.442695
      %v1998 = vpow.pop %v1997
      %v1999 = vmul.f32 %v1903, 1.442695
      %v2000 = vpow.pop %v1999
      %v2001 = vmul.f32 %v1904, 1.442695
      %v2002 = vpow.pop %v2001
      %v2003 = vmul.f32 %v1905, 1.442695
      %v2004 = vpow.pop %v2003
      %v2005 = vmul.f32 %v1906, 1.442695
      %v2006 = vpow.pop %v2005
      %v2007 = vmul.f32 %v1907, 1.442695
      %v2008 = vpow.pop %v2007
      %v2009 = vmul.f32 %v1908, 1.442695
      %v2010 = vpow.pop %v2009
      %v2011 = vmul.f32 %v1909, 1.442695
      %v2012 = vpow.pop %v2011
      %v2013 = vmul.f32 %v1910, 1.442695
      %v2014 = vpow.pop %v2013
      %v2015 = vmul.f32 %v1911, 1.442695
      %v2016 = vpow.pop %v2015
      %v2017 = vmul.f32 %v1912, 1.442695
      %v2018 = vpow.pop %v2017
      %v2019 = vmul.f32 %v1913, 1.442695
      %v2020 = vpow.pop %v2019
      %v2021 = vmul.f32 %v1914, 1.442695
      %v2022 = vpow.pop %v2021
      %v2023 = vmul.f32 %v1915, 1.442695
      %v2024 = vpow.pop %v2023
      %v2025 = vmul.f32 %v1916, 1.442695
      %v2026 = vpow.pop %v2025
      %v2027 = vmul.f32 %v1917, 1.442695
      %v2028 = vpow.pop %v2027
      %v2029 = vmul.f32 %v1918, 1.442695
      %v2030 = vpow.pop %v2029
      %v2031 = vadd.f32 %v1920, 1.0
      %v2032 = vadd.f32 %v1922, 1.0
      %v2033 = vadd.f32 %v1924, 1.0
      %v2034 = vadd.f32 %v1926, 1.0
      %v2035 = vadd.f32 %v1928, 1.0
      %v2036 = vadd.f32 %v1930, 1.0
      %v2037 = vadd.f32 %v1932, 1.0
      %v2038 = vadd.f32 %v1934, 1.0
      %v2039 = vadd.f32 %v1936, 1.0
      %v2040 = vadd.f32 %v1938, 1.0
      %v2041 = vadd.f32 %v1940, 1.0
      %v2042 = vadd.f32 %v1942, 1.0
      %v2043 = vadd.f32 %v1944, 1.0
      %v2044 = vadd.f32 %v1946, 1.0
      %v2045 = vadd.f32 %v1948, 1.0
      %v2046 = vadd.f32 %v1950, 1.0
      %v2047 = vadd.f32 %v1952, 1.0
      %v2048 = vadd.f32 %v1954, 1.0
      %v2049 = vadd.f32 %v1956, 1.0
      %v2050 = vadd.f32 %v1958, 1.0
      %v2051 = vadd.f32 %v1960, 1.0
      %v2052 = vadd.f32 %v1962, 1.0
      %v2053 = vadd.f32 %v1964, 1.0
      %v2054 = vadd.f32 %v1966, 1.0
      %v2055 = vadd.f32 %v1968, 1.0
      %v2056 = vadd.f32 %v1970, 1.0
      %v2057 = vadd.f32 %v1972, 1.0
      %v2058 = vadd.f32 %v1974, 1.0
      %v2059 = vadd.f32 %v1976, 1.0
      %v2060 = vadd.f32 %v1978, 1.0
      %v2061 = vadd.f32 %v1980, 1.0
      %v2062 = vadd.f32 %v1982, 1.0
      %v2063 = vadd.f32 %v1984, 1.0
      %v2064 = vadd.f32 %v1986, 1.0
      %v2065 = vadd.f32 %v1988, 1.0
      %v2066 = vadd.f32 %v1990, 1.0
      %v2067 = vadd.f32 %v1992, 1.0
      %v2068 = vadd.f32 %v1994, 1.0
      %v2069 = vadd.f32 %v1996, 1.0
      %v2070 = vadd.f32 %v1998, 1.0
      %v2071 = vadd.f32 %v2000, 1.0
      %v2072 = vadd.f32 %v2002, 1.0
      %v2073 = vadd.f32 %v2004, 1.0
      %v2074 = vadd.f32 %v2006, 1.0
      %v2075 = vadd.f32 %v2008, 1.0
      %v2076 = vadd.f32 %v2010, 1.0
      %v2077 = vadd.f32 %v2012, 1.0
      %v2078 = vadd.f32 %v2014, 1.0
      %v2079 = vadd.f32 %v2016, 1.0
      %v2080 = vadd.f32 %v2018, 1.0
      %v2081 = vadd.f32 %v2020, 1.0
      %v2082 = vadd.f32 %v2022, 1.0
      %v2083 = vadd.f32 %v2024, 1.0
      %v2084 = vadd.f32 %v2026, 1.0
      %v2085 = vadd.f32 %v2028, 1.0
      %v2086 = vadd.f32 %v2030, 1.0
      %v2087 = vrcp.pop %v2031
      %v2088 = vrcp.pop %v2032
      %v2089 = vrcp.pop %v2033
      %v2090 = vrcp.pop %v2034
      %v2091 = vrcp.pop %v2035
      %v2092 = vrcp.pop %v2036
      %v2093 = vrcp.pop %v2037
      %v2094 = vrcp.pop %v2038
      %v2095 = vrcp.pop %v2039
      %v2096 = vrcp.pop %v2040
      %v2097 = vrcp.pop %v2041
      %v2098 = vrcp.pop %v2042
      %v2099 = vrcp.pop %v2043
      %v2100 = vrcp.pop %v2044
      %v2101 = vrcp.pop %v2045
      %v2102 = vrcp.pop %v2046
      %v2103 = vrcp.pop %v2047
      %v2104 = vrcp.pop %v2048
      %v2105 = vrcp.pop %v2049
      %v2106 = vrcp.pop %v2050
      %v2107 = vrcp.pop %v2051
      %v2108 = vrcp.pop %v2052
      %v2109 = vrcp.pop %v2053
      %v2110 = vrcp.pop %v2054
      %v2111 = vrcp.pop %v2055
      %v2112 = vrcp.pop %v2056
      %v2113 = vrcp.pop %v2057
      %v2114 = vrcp.pop %v2058
      %v2115 = vrcp.pop %v2059
      %v2116 = vrcp.pop %v2060
      %v2117 = vrcp.pop %v2061
      %v2118 = vrcp.pop %v2062
      %v2119 = vrcp.pop %v2063
      %v2120 = vrcp.pop %v2064
      %v2121 = vrcp.pop %v2065
      %v2122 = vrcp.pop %v2066
      %v2123 = vrcp.pop %v2067
      %v2124 = vrcp.pop %v2068
      %v2125 = vrcp.pop %v2069
      %v2126 = vrcp.pop %v2070
      %v2127 = vrcp.pop %v2071
      %v2128 = vrcp.pop %v2072
      %v2129 = vrcp.pop %v2073
      %v2130 = vrcp.pop %v2074
      %v2131 = vrcp.pop %v2075
      %v2132 = vrcp.pop %v2076
      %v2133 = vrcp.pop %v2077
      %v2134 = vrcp.pop %v2078
      %v2135 = vrcp.pop %v2079
      %v2136 = vrcp.pop %v2080
      %v2137 = vrcp.pop %v2081
      %v2138 = vrcp.pop %v2082
      %v2139 = vrcp.pop %v2083
      %v2140 = vrcp.pop %v2084
      %v2141 = vrcp.pop %v2085
      %v2142 = vrcp.pop %v2086
      %v2143 = vmin.f32 %v2087, 1.0
      %v2144 = vmin.f32 %v2088, 1.0
      %v2145 = vmin.f32 %v2089, 1.0
      %v2146 = vmin.f32 %v2090, 1.0
      %v2147 = vmin.f32 %v2091, 1.0
      %v2148 = vmin.f32 %v2092, 1.0
      %v2149 = vmin.f32 %v2093, 1.0
      %v2150 = vmin.f32 %v2094, 1.0
      %v2151 = vmin.f32 %v2095, 1.0
      %v2152 = vmin.f32 %v2096, 1.0
      %v2153 = vmin.f32 %v2097, 1.0
      %v2154 = vmin.f32 %v2098, 1.0
      %v2155 = vmin.f32 %v2099, 1.0
      %v2156 = vmin.f32 %v2100, 1.0
      %v2157 = vmin.f32 %v2101, 1.0
      %v2158 = vmin.f32 %v2102, 1.0
      %v2159 = vmin.f32 %v2103, 1.0
      %v2160 = vmin.f32 %v2104, 1.0
      %v2161 = vmin.f32 %v2105, 1.0
      %v2162 = vmin.f32 %v2106, 1.0
      %v2163 = vmin.f32 %v2107, 1.0
      %v2164 = vmin.f32 %v2108, 1.0
      %v2165 = vmin.f32 %v2109, 1.0
      %v2166 = vmin.f32 %v2110, 1.0
      %v2167 = vmin.f32 %v2111, 1.0
      %v2168 = vmin.f32 %v2112, 1.0
      %v2169 = vmin.f32 %v2113, 1.0
      %v2170 = vmin.f32 %v2114, 1.0
      %v2171 = vmin.f32 %v2115, 1.0
      %v2172 = vmin.f32 %v2116, 1.0
      %v2173 = vmin.f32 %v2117, 1.0
      %v2174 = vmin.f32 %v2118, 1.0
      %v2175 = vmin.f32 %v2119, 1.0
      %v2176 = vmin.f32 %v2120, 1.0
      %v2177 = vmin.f32 %v2121, 1.0
      %v2178 = vmin.f32 %v2122, 1.0
      %v2179 = vmin.f32 %v2123, 1.0
      %v2180 = vmin.f32 %v2124, 1.0
      %v2181 = vmin.f32 %v2125, 1.0
      %v2182 = vmin.f32 %v2126, 1.0
      %v2183 = vmin.f32 %v2127, 1.0
      %v2184 = vmin.f32 %v2128, 1.0
      %v2185 = vmin.f32 %v2129, 1.0
      %v2186 = vmin.f32 %v2130, 1.0
      %v2187 = vmin.f32 %v2131, 1.0
      %v2188 = vmin.f32 %v2132, 1.0
      %v2189 = vmin.f32 %v2133, 1.0
      %v2190 = vmin.f32 %v2134, 1.0
      %v2191 = vmin.f32 %v2135, 1.0
      %v2192 = vmin.f32 %v2136, 1.0
      %v2193 = vmin.f32 %v2137, 1.0
      %v2194 = vmin.f32 %v2138, 1.0
      %v2195 = vmin.f32 %v2139, 1.0
      %v2196 = vmin.f32 %v2140, 1.0
      %v2197 = vmin.f32 %v2141, 1.0
      %v2198 = vmin.f32 %v2142, 1.0
      %v2199 = vpack.c.bf16 %v2144, %v2143
      %v2200 = vpack.c.bf16 %v2146, %v2145
      %v2201 = vpack.c.bf16 %v2148, %v2147
      %v2202 = vpack.c.bf16 %v2149, %v2149
      %v2203 = vpack.c.bf16 %v2151, %v2150
      %v2204 = vpack.c.bf16 %v2153, %v2152
      %v2205 = vpack.c.bf16 %v2155, %v2154
      %v2206 = vpack.c.bf16 %v2156, %v2156
      %v2207 = vpack.c.bf16 %v2158, %v2157
      %v2208 = vpack.c.bf16 %v2160, %v2159
      %v2209 = vpack.c.bf16 %v2162, %v2161
      %v2210 = vpack.c.bf16 %v2163, %v2163
      %v2211 = vpack.c.bf16 %v2165, %v2164
      %v2212 = vpack.c.bf16 %v2167, %v2166
      %v2213 = vpack.c.bf16 %v2169, %v2168
      %v2214 = vpack.c.bf16 %v2170, %v2170
      %v2215 = vpack.c.bf16 %v2172, %v2171
      %v2216 = vpack.c.bf16 %v2174, %v2173
      %v2217 = vpack.c.bf16 %v2176, %v2175
      %v2218 = vpack.c.bf16 %v2177, %v2177
      %v2219 = vpack.c.bf16 %v2179, %v2178
      %v2220 = vpack.c.bf16 %v2181, %v2180
      %v2221 = vpack.c.bf16 %v2183, %v2182
      %v2222 = vpack.c.bf16 %v2184, %v2184
      %v2223 = vpack.c.bf16 %v2186, %v2185
      %v2224 = vpack.c.bf16 %v2188, %v2187
      %v2225 = vpack.c.bf16 %v2190, %v2189
      %v2226 = vpack.c.bf16 %v2191, %v2191
      %v2227 = vpack.c.bf16 %v2193, %v2192
      %v2228 = vpack.c.bf16 %v2195, %v2194
      %v2229 = vpack.c.bf16 %v2197, %v2196
      %v2230 = vpack.c.bf16 %v2198, %v2198
      %2231 = vst [vmem:[%s342] sm:$0xff] %v2199
      %2232 = vst [vmem:[%s342 + $0x8] sm:$0xff] %v2200
      %2233 = vst [vmem:[%s342 + $0x10] sm:$0xff] %v2201
      %vm2234 = vcmask 125952
      %2235 = vst.msk [vmem:[%s342 + $0x18] sm:$0xf] %vm2234, %v2202
      %2236 = vst [vmem:[%s342 + $0x1c] sm:$0xff] %v2203
      %2237 = vst [vmem:[%s342 + $0x24] sm:$0xff] %v2204
      %2238 = vst [vmem:[%s342 + $0x2c] sm:$0xff] %v2205
      %2239 = vst.msk [vmem:[%s342 + $0x34] sm:$0xf] %vm2234, %v2206
      %2240 = vst [vmem:[%s342 + $0x38] sm:$0xff] %v2207
      %2241 = vst [vmem:[%s342 + $0x40] sm:$0xff] %v2208
      %2242 = vst [vmem:[%s342 + $0x48] sm:$0xff] %v2209
      %2243 = vst.msk [vmem:[%s342 + $0x50] sm:$0xf] %vm2234, %v2210
      %2244 = vst [vmem:[%s342 + $0x54] sm:$0xff] %v2211
      %2245 = vst [vmem:[%s342 + $0x5c] sm:$0xff] %v2212
      %2246 = vst [vmem:[%s342 + $0x64] sm:$0xff] %v2213
      %2247 = vst.msk [vmem:[%s342 + $0x6c] sm:$0xf] %vm2234, %v2214
      %2248 = vst [vmem:[%s342 + $0x70] sm:$0xff] %v2215
      %2249 = vst [vmem:[%s342 + $0x78] sm:$0xff] %v2216
      %2250 = vst [vmem:[%s342 + $0x80] sm:$0xff] %v2217
      %2251 = vst.msk [vmem:[%s342 + $0x88] sm:$0xf] %vm2234, %v2218
      %2252 = vst [vmem:[%s342 + $0x8c] sm:$0xff] %v2219
      %2253 = vst [vmem:[%s342 + $0x94] sm:$0xff] %v2220
      %2254 = vst [vmem:[%s342 + $0x9c] sm:$0xff] %v2221
      %2255 = vst.msk [vmem:[%s342 + $0xa4] sm:$0xf] %vm2234, %v2222
      %2256 = vst [vmem:[%s342 + $0xa8] sm:$0xff] %v2223
      %2257 = vst [vmem:[%s342 + $0xb0] sm:$0xff] %v2224
      %2258 = vst [vmem:[%s342 + $0xb8] sm:$0xff] %v2225
      %2259 = vst.msk [vmem:[%s342 + $0xc0] sm:$0xf] %vm2234, %v2226
      %2260 = vst [vmem:[%s342 + $0xc4] sm:$0xff] %v2227
      %2261 = vst [vmem:[%s342 + $0xcc] sm:$0xff] %v2228
      %2262 = vst [vmem:[%s342 + $0xd4] sm:$0xff] %v2229
      %2263 = vst.msk [vmem:[%s342 + $0xdc] sm:$0xf] %vm2234, %v2230
      %2264 = vrot.lane.b32.xlu0 %v1367, 16
      %v2265 = vpop.permute.xlu0 %2264
      %2266 = vrot.lane.b32.xlu0 %v1368, 16
      %v2267 = vpop.permute.xlu0 %2266
      %2268 = vrot.lane.b32.xlu0 %v1369, 16
      %v2269 = vpop.permute.xlu0 %2268
      %2270 = vrot.lane.b32.xlu0 %v1370, 16
      %v2271 = vpop.permute.xlu0 %2270
      %2272 = vrot.lane.b32.xlu0 %v1371, 16
      %v2273 = vpop.permute.xlu0 %2272
      %2274 = vrot.lane.b32.xlu0 %v1372, 16
      %v2275 = vpop.permute.xlu0 %2274
      %2276 = vrot.lane.b32.xlu0 %v1373, 16
      %v2277 = vpop.permute.xlu0 %2276
      %2278 = vrot.lane.b32.xlu0 %v1374, 16
      %v2279 = vpop.permute.xlu0 %2278
      %v2288 = vsel %vm1379, %v1112, %v1279
      %v2289 = vsel %vm1379, %v1115, %v1280
      %v2290 = vsel %vm1379, %v1118, %v1281
      %v2291 = vsel %vm1379, %v1121, %v1282
      %v2292 = vsel %vm1379, %v1124, %v1283
      %v2293 = vsel %vm1379, %v1127, %v1284
      %v2294 = vsel %vm1379, %v1130, %v1285
      %v2295 = vsel %vm1379, %v1133, %v1286
      %v2296 = vsel %vm834, %v2288, %v2265
      %v2297 = vsel %vm834, %v2289, %v2267
      %v2298 = vsel %vm834, %v2290, %v2269
      %v2299 = vsel %vm834, %v2291, %v2271
      %v2300 = vsel %vm834, %v2292, %v2273
      %v2301 = vsel %vm834, %v2293, %v2275
      %v2302 = vsel %vm834, %v2294, %v2277
      %v2303 = vsel %vm834, %v2295, %v2279
      %vm2304 = vcmask 195584
      %2305 = vst.msk [vmem:[%s348] sm:$0xff] %vm2304, %v2296
      %2306 = vst.msk [vmem:[%s348 + $0x8] sm:$0xff] %vm2304, %v2297
      %2307 = vst.msk [vmem:[%s348 + $0x10] sm:$0xff] %vm2304, %v2298
      %2308 = vst.msk [vmem:[%s348 + $0x18] sm:$0xff] %vm2304, %v2299
      %2309 = vst.msk [vmem:[%s348 + $0x20] sm:$0xff] %vm2304, %v2300
      %2310 = vst.msk [vmem:[%s348 + $0x28] sm:$0xff] %vm2304, %v2301
      %2311 = vst.msk [vmem:[%s348 + $0x30] sm:$0xff] %vm2304, %v2302
      %2312 = vst.msk [vmem:[%s348 + $0x38] sm:$0xff] %vm2304, %v2303
      %s2313 = smul.u32 8, %s20
      %p2314 = scmp.lt.s32.totalorder %s2313, 31
      %s2315 = scalar_select %p2314, %s2313, 31
      %s2316 = smul.addr %s2315, 7
      %s2317 = smul.addr %s2316, 4
      %s2318 = scalar_lea.vmem %s7, %s2317
      %s2319 = smul.u32 8, %s20
      %p2320 = scmp.lt.s32.totalorder %s2319, 31
      %s2321 = scalar_select %p2320, %s2319, 31
      %s2322 = smul.addr %s2321, 8
      %s2323 = scalar_lea.vmem %s8, %s2322
      // Predicated region
      $region49: #{base_vae_forward.1} parent=47 // pred_check
        %p2324 = pneg %p195
      $region50: #{base_vae_forward.1} parent=47 // pred_check_branch
        %2326 = sbr.rel (%p2324) target = $region52
      $region51: #{base_vae_forward.1} parent=47 // pred_region
        %s2327 = smul.u32 8, %s20
      $region52: #{base_vae_forward.1} parent=47 // pred_fallthru
        _
      // Predicated region
      $region53: #{base_vae_forward.1} parent=47 // pred_check
        %p2328 = pneg %p221
      $region54: #{base_vae_forward.1} parent=47 // pred_check_branch
        %2330 = sbr.rel (%p2328) target = $region56
      $region55: #{base_vae_forward.1} parent=47 // pred_region
        %s2331 = smul.u32 8, %s20
      $region56: #{base_vae_forward.1} parent=47 // pred_fallthru
        _
    $region48: #{base_vae_forward.1} parent=5 // pred_fallthru
      _
    %p2332 = scmp.le.s32.totalorder 2, %s15
    // Predicated region
    $region57: #{base_vae_forward.1} parent=5 // pred_check
      %p2333 = pneg %p2332
    $region58: #{base_vae_forward.1} parent=5 // pred_check_branch
      %2335 = sbr.rel (%p2333) target = $region60
    $region59: #{base_vae_forward.1} parent=5 // pred_region
      %s2336 = ssub.s32 %s15, 2
      // Predicated region
      $region61: #{base_vae_forward.1} parent=59 // pred_check
        %p2337 = pneg %p201
      $region62: #{base_vae_forward.1} parent=59 // pred_check_branch
        %2339 = sbr.rel (%p2337) target = $region64
      $region63: #{base_vae_forward.1} parent=59 // pred_region
        %s2340 = smul.u32 8, %s21
        %p2341 = scmp.lt.s32.totalorder %s2340, 31
        %s2342 = scalar_select %p2341, %s2340, 31
        %s2343 = smul.addr %s2342, 7
        %s2344 = smul.addr %s2343, 4
        %s2345 = scalar_lea.vmem %s7, %s2344
      $region64: #{base_vae_forward.1} parent=59 // pred_fallthru
        _
      // Predicated region
      $region65: #{base_vae_forward.1} parent=59 // pred_check
        %p2346 = pneg %p227
      $region66: #{base_vae_forward.1} parent=59 // pred_check_branch
        %2348 = sbr.rel (%p2346) target = $region68
      $region67: #{base_vae_forward.1} parent=59 // pred_region
        %s2349 = smul.u32 8, %s21
        %p2350 = scmp.lt.s32.totalorder %s2349, 31
        %s2351 = scalar_select %p2350, %s2349, 31
        %s2352 = smul.addr %s2351, 8
        %s2353 = scalar_lea.vmem %s8, %s2352
      $region68: #{base_vae_forward.1} parent=59 // pred_fallthru
        _
    $region60: #{base_vae_forward.1} parent=5 // pred_fallthru
      _
  $region6: #{base_vae_forward.1} parent=0 // loop_footer
    %s19 = sadd.s32 1, %s15
  $region7: #{base_vae_forward.1} parent=0 // loop_footer_branch
    %14 = sbr.rel target = $region3
  $region8: #{base_vae_forward.1} parent=0 // loop_exit
    _

</llo_original>
